<compile_context>
chip_gen: v6e
topology: v6e:2x2x1
jax: 0.10.0
libtpu: 0.0.40
codegen_flags: <defaults>
</compile_context>

<pallas_src>
import jax
import jax.numpy as jnp
import numpy as np
from jax.experimental import pallas as pl
from jax.experimental.pallas import tpu as pltpu


def _round_up(x, m):
    return ((x + m - 1) // m) * m


# ----------------------------- Pallas kernel --------------------------------

def _forward_attention_kernel(params_ref, body_ref, halo_ref, w_ref,
                              feat_ref, mupd_ref, convf_ref, mact_ref,
                              y_scratch):
    """One (batch, output-row-band) grid step.

    params_ref : SMEM (8,) f32   [a, mu, sigma1, sigma2, alpha, 0, 0, 0]
    body_ref   : VMEM (band*Wo1p, Cp) bf16   phase rows [r0, r0+band)
    halo_ref   : VMEM (Wo1p, Cp)      bf16   phase row   r0+band
    w_ref      : VMEM (Cp, 8*cout)    bf16   4 taps x block-diag [conv|maskConv]
    feat/mupd/convf/mact_ref : VMEM (band, Wo, cout) f32
    y_scratch  : VMEM ((band+1)*Wo1p, Cp) bf16
    """
    body_rows = body_ref.shape[0]
    wo1p = halo_ref.shape[0]
    band, wo, cout = feat_ref.shape
    c2 = 2 * cout

    # Assemble band + halo phase rows contiguously (small, 8-aligned VMEM copy).
    y_scratch[0:body_rows, :] = body_ref[...]
    y_scratch[body_rows:body_rows + wo1p, :] = halo_ref[...]

    # One fused MXU matmul for all 4 phase taps of both convs (f32 accumulate).
    z = jnp.dot(y_scratch[...], w_ref[...], preferred_element_type=jnp.float32)
    z3 = z.reshape(band + 1, wo1p, 8 * cout)

    # Combine the 4 shifted tap slabs -> [convFeatures | maskFeatures].
    s = (z3[0:band,     0:wo,     0 * c2:1 * c2] +
         z3[0:band,     1:wo + 1, 1 * c2:2 * c2] +
         z3[1:band + 1, 0:wo,     2 * c2:3 * c2] +
         z3[1:band + 1, 1:wo + 1, 3 * c2:4 * c2])
    conv_f = s[:, :, :cout]
    mask_f = s[:, :, cout:]

    a = params_ref[0]
    mu = params_ref[1]
    sigma1 = params_ref[2]
    sigma2 = params_ref[3]
    alpha = params_ref[4]

    # GaussActivation: single exp, sigma chosen by the branch condition.
    lower = mask_f < mu
    diff = mask_f - mu
    sigma = jnp.where(lower, sigma1, sigma2)
    e = jnp.exp(-sigma * diff * diff)
    mask_activ = jnp.where(lower, a * e, 1.0 + (a - 1.0) * e)

    conv_out = conv_f * mask_activ

    # MaskUpdate: relu(maskFeatures) ** alpha, guarded at exactly 0.
    relu_m = jnp.maximum(mask_f, 0.0)
    mask_update = jnp.where(
        relu_m > 0.0,
        jnp.exp(alpha * jnp.log(jnp.maximum(relu_m, jnp.float32(1e-30)))),
        0.0)

    # LeakyReLU(0.2) (bn=False, activ='leaky' defaults of ForwardAttention).
    features = jnp.where(conv_out >= 0.0, conv_out, 0.2 * conv_out)

    feat_ref[...] = features
    mupd_ref[...] = mask_update
    convf_ref[...] = conv_f
    mact_ref[...] = mask_activ


# ------------------------------ JAX glue -------------------------------------

def _space_to_depth_2x2(x_pad, ho, wo):
    """(B, 2*(Ho+1), 2*(Wo+1), C) -> (B, Ho+1, Wo+1, 4*C), channel = (ph,pw,c)."""
    b = x_pad.shape[0]
    c = x_pad.shape[-1]
    y = x_pad.reshape(b, ho + 1, 2, wo + 1, 2, c)
    y = jnp.transpose(y, (0, 1, 3, 2, 4, 5))
    return y.reshape(b, ho + 1, wo + 1, 4 * c)


def _phase_weights(w_oihw):
    """Torch conv weight (O, I, 4, 4) -> (4 [t=(u,q)], 4*I [(ph,pw,i)], O)."""
    o, i, _, _ = w_oihw.shape
    w = w_oihw.reshape(o, i, 2, 2, 2, 2)          # (o, i, u, ph, q, pw)
    w = jnp.transpose(w, (2, 4, 3, 5, 1, 0))      # (u, q, ph, pw, i, o)
    return w.reshape(4, 4 * i, o)


def _pick_band(ho, batch, per_band_bytes, budget):
    divisors = [d for d in range(1, ho + 1) if ho % d == 0]
    fits = [d for d in divisors if per_band_bytes(d) <= budget]
    if not fits:
        return 1
    band = max(fits)
    # v7x megacore: keep >= 2 grid steps so both TensorCores get work.
    if batch * (ho // band) < 2:
        smaller = [d for d in fits if d < ho]
        if smaller:
            band = max(smaller)
    return band


@jax.jit
def forward_attention(features_nhwc, masks_nhwc, w_conv, w_mask_conv,
                      gauss_a=1.1, gauss_mu=2.0, gauss_sigma1=1.0,
                      gauss_sigma2=1.0, mask_alpha=0.8):
    """ForwardAttention(sample='down-4', bn=False, activ='leaky') forward.

    features_nhwc: (B, H, W, Cin), masks_nhwc: (B, H, W, Cmask)
    w_conv: (Cout, Cin, 4, 4), w_mask_conv: (Cout, Cmask, 4, 4) (torch layout)
    Returns NHWC tensors: (features, maskUpdated, convFeatures, maskActiv).
    """
    b, h, w, cin = features_nhwc.shape
    cmask = masks_nhwc.shape[-1]
    cout = w_conv.shape[0]
    if h % 2 != 0 or w % 2 != 0:
        raise ValueError("down-4 ForwardAttention kernel requires even H and W")
    ho, wo = h // 2, w // 2
    wo1 = wo + 1
    wo1p = _round_up(wo1, 8)
    cp = 4 * (cin + cmask)

    # Phase (2x2 space-to-depth) tensor: raw-input-sized; no im2col in HBM.
    # TODO(synk): fetch phase rows straight from HBM (memory_space=pl.ANY +
    # manual DMA) to also remove this single raw-input-sized relayout pass.
    xf = jnp.pad(features_nhwc, ((0, 0), (1, 1), (1, 1), (0, 0)))
    xm = jnp.pad(masks_nhwc, ((0, 0), (1, 1), (1, 1), (0, 0)))
    y = jnp.concatenate(
        [_space_to_depth_2x2(xf, ho, wo), _space_to_depth_2x2(xm, ho, wo)],
        axis=-1)                                       # (B, Ho+1, Wo+1, Cp)
    if wo1p != wo1:
        y = jnp.pad(y, ((0, 0), (0, 0), (0, wo1p - wo1), (0, 0)))
    y = y.astype(jnp.bfloat16).reshape(b, (ho + 1) * wo1p, cp)

    # Fused per-tap weight: 4 taps x block-diagonal [conv | maskConv].
    wf_t = _phase_weights(w_conv)                      # (4, 4*Cin,  cout)
    wm_t = _phase_weights(w_mask_conv)                 # (4, 4*Cmask, cout)
    w_top = jnp.concatenate(
        [wf_t, jnp.zeros((4, 4 * cin, cout), wf_t.dtype)], axis=-1)
    w_bot = jnp.concatenate(
        [jnp.zeros((4, 4 * cmask, cout), wm_t.dtype), wm_t], axis=-1)
    w_blk = jnp.concatenate([w_top, w_bot], axis=1)    # (4, Cp, 2*cout)
    w_big = jnp.transpose(w_blk, (1, 0, 2)).reshape(cp, 8 * cout)
    w_big = w_big.astype(jnp.bfloat16)

    # Clamped runtime params (same clamps GaussActivation.forward applies).
    def _clipf(v, lo, hi):
        return jnp.clip(jnp.asarray(v, jnp.float32), lo, hi)
    params = jnp.stack([
        _clipf(gauss_a, 1.01, 6.0),
        _clipf(gauss_mu, 0.1, 3.0),
        _clipf(gauss_sigma1, 0.5, 2.0),
        _clipf(gauss_sigma2, 0.5, 2.0),
        jnp.asarray(mask_alpha, jnp.float32),
        jnp.zeros((), jnp.float32),
        jnp.zeros((), jnp.float32),
        jnp.zeros((), jnp.float32),
    ])

    # Band (output rows per grid step) chosen to fit VMEM and feed 2 TCs.
    def per_band_bytes(band):
        in_b = (band + 1) * wo1p * cp * 2
        w_b = cp * 8 * cout * 2
        out_b = 4 * band * wo * cout * 4
        z_b = (band + 1) * wo1p * 8 * cout * 4
        scratch_b = (band + 1) * wo1p * cp * 2
        return 2 * (in_b + w_b + out_b) + scratch_b + 3 * z_b + (2 << 20)

    band = _pick_band(ho, b, per_band_bytes, budget=28 << 20)
    n_bands = ho // band
    grid = (b, n_bands)
    vmem_limit = int(min(max(per_band_bytes(band), 16 << 20), 30 << 20))

    cost = pl.CostEstimate(
        flops=2 * b * (ho + 1) * wo1p * cp * 8 * cout,
        transcendentals=3 * b * ho * wo * cout,
        bytes_accessed=int(y.size * 2 + w_big.size * 2 + params.size * 4
                           + 4 * b * ho * wo * cout * 4),
    )

    out_sds = jax.ShapeDtypeStruct((b, ho, wo, cout), jnp.float32)
    out_spec = pl.BlockSpec((None, band, wo, cout),
                            lambda bi, ri: (bi, ri, 0, 0))

    outs = pl.pallas_call(
        _forward_attention_kernel,
        out_shape=(out_sds, out_sds, out_sds, out_sds),
        grid=grid,
        in_specs=[
            pl.BlockSpec(memory_space=pltpu.MemorySpace.SMEM),        # params
            pl.BlockSpec((None, band * wo1p, cp),
                         lambda bi, ri: (bi, ri, 0)),                 # body rows
            pl.BlockSpec((None, wo1p, cp),
                         lambda bi, ri: (bi, (ri + 1) * band, 0)),    # halo row
            pl.BlockSpec((cp, 8 * cout), lambda bi, ri: (0, 0)),      # weights
        ],
        out_specs=(out_spec, out_spec, out_spec, out_spec),
        scratch_shapes=[pltpu.VMEM(((band + 1) * wo1p, cp), jnp.bfloat16)],
        compiler_params=pltpu.CompilerParams(
            dimension_semantics=("parallel", "parallel"),
            vmem_limit_bytes=vmem_limit),
        cost_estimate=cost,
    )(params, y, y, w_big)

    return outs  # (features, maskUpdated, convFeatures, maskActiv)


# ------------------------------ reference ------------------------------------

def _reference(features_nhwc, masks_nhwc, w_conv, w_mask_conv):
    dn = jax.lax.conv_dimension_numbers(features_nhwc.shape, w_conv.shape,
                                        ("NHWC", "OIHW", "NHWC"))
    conv_f = jax.lax.conv_general_dilated(
        features_nhwc, w_conv, (2, 2), ((1, 1), (1, 1)), dimension_numbers=dn,
        precision=jax.lax.Precision.HIGHEST)
    dn_m = jax.lax.conv_dimension_numbers(masks_nhwc.shape, w_mask_conv.shape,
                                          ("NHWC", "OIHW", "NHWC"))
    mask_f = jax.lax.conv_general_dilated(
        masks_nhwc, w_mask_conv, (2, 2), ((1, 1), (1, 1)),
        dimension_numbers=dn_m, precision=jax.lax.Precision.HIGHEST)
    a, mu, s1, s2 = 1.1, 2.0, 1.0, 1.0
    d2 = (mask_f - mu) ** 2
    mact = jnp.where(mask_f < mu, a * jnp.exp(-s1 * d2),
                     1.0 + (a - 1.0) * jnp.exp(-s2 * d2))
    conv_out = conv_f * mact
    maskup = jnp.power(jnp.maximum(mask_f, 0.0), 0.8)
    feats = jnp.where(conv_out >= 0.0, conv_out, 0.2 * conv_out)
    return feats, maskup, conv_f, mact


# -------------------------------- main ----------------------------------------

if __name__ == "__main__":
    # batch=2, inputChannels=4 (so maskConv takes 3 channels), outputChannels=32,
    # spatial 16x16 -> 8x8 after the down-4 conv.
    B, H, W = 2, 16, 16
    C_IN, C_MASK, C_OUT = 4, 3, 32

    key = jax.random.PRNGKey(0)
    k1, k2, k3, k4 = jax.random.split(key, 4)

    features = jax.random.normal(k1, (B, H, W, C_IN), dtype=jnp.float32)
    masks = jax.random.uniform(k2, (B, H, W, C_MASK), dtype=jnp.float32)

    # LBAM weights_init ~ N(0, 0.02).
    w_conv = 0.02 * jax.random.normal(k3, (C_OUT, C_IN, 4, 4), dtype=jnp.float32)
    w_mask = 0.02 * jax.random.normal(k4, (C_OUT, C_MASK, 4, 4), dtype=jnp.float32)

    outs = forward_attention(features, masks, w_conv, w_mask)
    outs = jax.block_until_ready(outs)

    refs = _reference(features, masks, w_conv, w_mask)
    for got, ref in zip(outs, refs):
        # bf16 matmul inputs with f32 accumulation -> matching tolerance.
        np.testing.assert_allclose(np.asarray(got), np.asarray(ref),
                                   rtol=2e-2, atol=2e-2)

    print("KERNEL_OK")
</pallas_src>

<mosaic_0001>
module attributes {stable_mosaic.version = 11 : i64} {
  func.func @_forward_attention_kernel(%arg0: i32, %arg1: i32, %arg2: memref<8xf32, #tpu.memory_space<smem>>, %arg3: memref<1x128x28xbf16, #tpu.memory_space<vmem>>, %arg4: memref<1x16x28xbf16, #tpu.memory_space<vmem>>, %arg5: memref<28x256xbf16, #tpu.memory_space<vmem>>, %arg6: memref<1x8x8x32xf32, #tpu.memory_space<vmem>>, %arg7: memref<1x8x8x32xf32, #tpu.memory_space<vmem>>, %arg8: memref<1x8x8x32xf32, #tpu.memory_space<vmem>>, %arg9: memref<1x8x8x32xf32, #tpu.memory_space<vmem>>, %arg10: memref<144x28xbf16, #tpu.memory_space<vmem>>) attributes {dimension_semantics = [#tpu.dimension_semantics<parallel>, #tpu.dimension_semantics<parallel>], iteration_bounds = array<i64: 2, 1>, scalar_prefetch = 0 : i64, scratch_operands = 1 : i64, tpu.core_type = #tpu.core_type<tc>, window_params = [{transform_indices = @transform_0, window_bounds = array<i64: 8>}, {transform_indices = @transform_1, window_bounds = array<i64: 1, 128, 28>}, {transform_indices = @transform_2, window_bounds = array<i64: 1, 16, 28>}, {pipeline_mode = #tpu.pipeline_mode<synchronous>, transform_indices = @transform_3, window_bounds = array<i64: 28, 256>}, {transform_indices = @transform_4, window_bounds = array<i64: 1, 8, 8, 32>}, {transform_indices = @transform_5, window_bounds = array<i64: 1, 8, 8, 32>}, {transform_indices = @transform_6, window_bounds = array<i64: 1, 8, 8, 32>}, {transform_indices = @transform_7, window_bounds = array<i64: 1, 8, 8, 32>}]} {
    %c0 = arith.constant 0 : index
    %c0_0 = arith.constant 0 : index
    %c0_1 = arith.constant 0 : index
    %0 = vector.load %arg3[%c0, %c0_0, %c0_1] : memref<1x128x28xbf16, #tpu.memory_space<vmem>>, vector<1x128x28xbf16>
    %1 = vector.shape_cast %0 : vector<1x128x28xbf16> to vector<128x28xbf16>
    %c0_2 = arith.constant 0 : index
    %c0_3 = arith.constant 0 : index
    %2 = vector.load %arg10[%c0_2, %c0_3] : memref<144x28xbf16, #tpu.memory_space<vmem>>, vector<128x28xbf16>
    tpu.vector_store %arg10[%c0_2, %c0_3], %1 {strides = array<i32>} : memref<144x28xbf16, #tpu.memory_space<vmem>>, vector<128x28xbf16>,
    %c0_4 = arith.constant 0 : index
    %c0_5 = arith.constant 0 : index
    %c0_6 = arith.constant 0 : index
    %3 = vector.load %arg4[%c0_4, %c0_5, %c0_6] : memref<1x16x28xbf16, #tpu.memory_space<vmem>>, vector<1x16x28xbf16>
    %4 = vector.shape_cast %3 : vector<1x16x28xbf16> to vector<16x28xbf16>
    %c128 = arith.constant 128 : index
    %c0_7 = arith.constant 0 : index
    %5 = vector.load %arg10[%c128, %c0_7] : memref<144x28xbf16, #tpu.memory_space<vmem>>, vector<16x28xbf16>
    tpu.vector_store %arg10[%c128, %c0_7], %4 {strides = array<i32>} : memref<144x28xbf16, #tpu.memory_space<vmem>>, vector<16x28xbf16>,
    %c0_8 = arith.constant 0 : index
    %c0_9 = arith.constant 0 : index
    %6 = vector.load %arg10[%c0_8, %c0_9] : memref<144x28xbf16, #tpu.memory_space<vmem>>, vector<144x28xbf16>
    %c0_10 = arith.constant 0 : index
    %c0_11 = arith.constant 0 : index
    %7 = vector.load %arg5[%c0_10, %c0_11] : memref<28x256xbf16, #tpu.memory_space<vmem>>, vector<28x256xbf16>
    %cst = arith.constant dense<0.000000e+00> : vector<144x256xf32>
    %8 = tpu.matmul %6, %7, %cst {dimension_numbers = #tpu.dot_dimension_numbers<[1], [0], [0], [1], [0, 0, 1, 1], [], []>} : vector<144x28xbf16>, vector<28x256xbf16>, vector<144x256xf32> -> vector<144x256xf32>
    %9 = vector.shape_cast %8 : vector<144x256xf32> to vector<9x16x256xf32>
    %10 = vector.extract_strided_slice %9 {offsets = [0, 0, 0], sizes = [8, 8, 64], strides = [1, 1, 1]} : vector<9x16x256xf32> to vector<8x8x64xf32>
    %11 = vector.extract_strided_slice %9 {offsets = [0, 1, 64], sizes = [8, 8, 64], strides = [1, 1, 1]} : vector<9x16x256xf32> to vector<8x8x64xf32>
    %12 = arith.addf %10, %11 : vector<8x8x64xf32>
    %13 = vector.extract_strided_slice %9 {offsets = [1, 0, 128], sizes = [8, 8, 64], strides = [1, 1, 1]} : vector<9x16x256xf32> to vector<8x8x64xf32>
    %14 = arith.addf %12, %13 : vector<8x8x64xf32>
    %15 = vector.extract_strided_slice %9 {offsets = [1, 1, 192], sizes = [8, 8, 64], strides = [1, 1, 1]} : vector<9x16x256xf32> to vector<8x8x64xf32>
    %16 = arith.addf %14, %15 : vector<8x8x64xf32>
    %17 = vector.extract_strided_slice %16 {offsets = [0, 0, 0], sizes = [8, 8, 32], strides = [1, 1, 1]} : vector<8x8x64xf32> to vector<8x8x32xf32>
    %18 = vector.extract_strided_slice %16 {offsets = [0, 0, 32], sizes = [8, 8, 32], strides = [1, 1, 1]} : vector<8x8x64xf32> to vector<8x8x32xf32>
    %c0_12 = arith.constant 0 : index
    %19 = memref.load %arg2[%c0_12] : memref<8xf32, #tpu.memory_space<smem>>
    %c1 = arith.constant 1 : index
    %20 = memref.load %arg2[%c1] : memref<8xf32, #tpu.memory_space<smem>>
    %c2 = arith.constant 2 : index
    %21 = memref.load %arg2[%c2] : memref<8xf32, #tpu.memory_space<smem>>
    %c3 = arith.constant 3 : index
    %22 = memref.load %arg2[%c3] : memref<8xf32, #tpu.memory_space<smem>>
    %c4 = arith.constant 4 : index
    %23 = memref.load %arg2[%c4] : memref<8xf32, #tpu.memory_space<smem>>
    %24 = vector.broadcast %20 : f32 to vector<8x8x32xf32>
    %25 = arith.cmpf olt, %18, %24 : vector<8x8x32xf32>
    %26 = vector.broadcast %20 : f32 to vector<8x8x32xf32>
    %27 = arith.subf %18, %26 : vector<8x8x32xf32>
    %28 = vector.broadcast %21 : f32 to vector<8x8x32xf32>
    %29 = vector.broadcast %22 : f32 to vector<8x8x32xf32>
    %30 = arith.select %25, %28, %29 : vector<8x8x32xi1>, vector<8x8x32xf32>
    %cst_13 = arith.constant 0.000000e+00 : f32
    %31 = vector.broadcast %cst_13 : f32 to vector<8x8x32xf32>
    %32 = arith.subf %31, %30 : vector<8x8x32xf32>
    %33 = arith.mulf %32, %27 : vector<8x8x32xf32>
    %34 = arith.mulf %33, %27 : vector<8x8x32xf32>
    %35 = math.exp %34 : vector<8x8x32xf32>
    %36 = vector.broadcast %19 : f32 to vector<8x8x32xf32>
    %37 = arith.mulf %36, %35 : vector<8x8x32xf32>
    %cst_14 = arith.constant 1.000000e+00 : f32
    %38 = arith.subf %19, %cst_14 : f32
    %39 = vector.broadcast %38 : f32 to vector<8x8x32xf32>
    %40 = arith.mulf %39, %35 : vector<8x8x32xf32>
    %cst_15 = arith.constant 1.000000e+00 : f32
    %41 = vector.broadcast %cst_15 : f32 to vector<8x8x32xf32>
    %42 = arith.addf %41, %40 : vector<8x8x32xf32>
    %43 = arith.select %25, %37, %42 : vector<8x8x32xi1>, vector<8x8x32xf32>
    %44 = arith.mulf %17, %43 : vector<8x8x32xf32>
    %cst_16 = arith.constant 0.000000e+00 : f32
    %45 = vector.broadcast %cst_16 : f32 to vector<8x8x32xf32>
    %46 = arith.maximumf %18, %45 : vector<8x8x32xf32>
    %cst_17 = arith.constant 0.000000e+00 : f32
    %47 = vector.broadcast %cst_17 : f32 to vector<8x8x32xf32>
    %48 = arith.cmpf ogt, %46, %47 : vector<8x8x32xf32>
    %cst_18 = arith.constant 1.000000e-30 : f32
    %49 = vector.broadcast %cst_18 : f32 to vector<8x8x32xf32>
    %50 = arith.maximumf %46, %49 : vector<8x8x32xf32>
    %51 = math.log %50 : vector<8x8x32xf32>
    %52 = vector.broadcast %23 : f32 to vector<8x8x32xf32>
    %53 = arith.mulf %52, %51 : vector<8x8x32xf32>
    %54 = math.exp %53 : vector<8x8x32xf32>
    %cst_19 = arith.constant 0.000000e+00 : f32
    %55 = vector.broadcast %cst_19 : f32 to vector<8x8x32xf32>
    %56 = arith.select %48, %54, %55 : vector<8x8x32xi1>, vector<8x8x32xf32>
    %cst_20 = arith.constant 0.000000e+00 : f32
    %57 = vector.broadcast %cst_20 : f32 to vector<8x8x32xf32>
    %58 = arith.cmpf oge, %44, %57 : vector<8x8x32xf32>
    %cst_21 = arith.constant 2.000000e-01 : f32
    %59 = vector.broadcast %cst_21 : f32 to vector<8x8x32xf32>
    %60 = arith.mulf %59, %44 : vector<8x8x32xf32>
    %61 = arith.select %58, %44, %60 : vector<8x8x32xi1>, vector<8x8x32xf32>
    %c0_22 = arith.constant 0 : index
    %c0_23 = arith.constant 0 : index
    %c0_24 = arith.constant 0 : index
    %c0_25 = arith.constant 0 : index
    %62 = vector.load %arg6[%c0_22, %c0_23, %c0_24, %c0_25] : memref<1x8x8x32xf32, #tpu.memory_space<vmem>>, vector<1x8x8x32xf32>
    %63 = vector.shape_cast %62 : vector<1x8x8x32xf32> to vector<8x8x32xf32>
    %64 = vector.shape_cast %61 : vector<8x8x32xf32> to vector<1x8x8x32xf32>
    tpu.vector_store %arg6[%c0_22, %c0_23, %c0_24, %c0_25], %64 {strides = array<i32>} : memref<1x8x8x32xf32, #tpu.memory_space<vmem>>, vector<1x8x8x32xf32>,
    %c0_26 = arith.constant 0 : index
    %c0_27 = arith.constant 0 : index
    %c0_28 = arith.constant 0 : index
    %c0_29 = arith.constant 0 : index
    %65 = vector.load %arg7[%c0_26, %c0_27, %c0_28, %c0_29] : memref<1x8x8x32xf32, #tpu.memory_space<vmem>>, vector<1x8x8x32xf32>
    %66 = vector.shape_cast %65 : vector<1x8x8x32xf32> to vector<8x8x32xf32>
    %67 = vector.shape_cast %56 : vector<8x8x32xf32> to vector<1x8x8x32xf32>
    tpu.vector_store %arg7[%c0_26, %c0_27, %c0_28, %c0_29], %67 {strides = array<i32>} : memref<1x8x8x32xf32, #tpu.memory_space<vmem>>, vector<1x8x8x32xf32>,
    %c0_30 = arith.constant 0 : index
    %c0_31 = arith.constant 0 : index
    %c0_32 = arith.constant 0 : index
    %c0_33 = arith.constant 0 : index
    %68 = vector.load %arg8[%c0_30, %c0_31, %c0_32, %c0_33] : memref<1x8x8x32xf32, #tpu.memory_space<vmem>>, vector<1x8x8x32xf32>
    %69 = vector.shape_cast %68 : vector<1x8x8x32xf32> to vector<8x8x32xf32>
    %70 = vector.shape_cast %17 : vector<8x8x32xf32> to vector<1x8x8x32xf32>
    tpu.vector_store %arg8[%c0_30, %c0_31, %c0_32, %c0_33], %70 {strides = array<i32>} : memref<1x8x8x32xf32, #tpu.memory_space<vmem>>, vector<1x8x8x32xf32>,
    %c0_34 = arith.constant 0 : index
    %c0_35 = arith.constant 0 : index
    %c0_36 = arith.constant 0 : index
    %c0_37 = arith.constant 0 : index
    %71 = vector.load %arg9[%c0_34, %c0_35, %c0_36, %c0_37] : memref<1x8x8x32xf32, #tpu.memory_space<vmem>>, vector<1x8x8x32xf32>
    %72 = vector.shape_cast %71 : vector<1x8x8x32xf32> to vector<8x8x32xf32>
    %73 = vector.shape_cast %43 : vector<8x8x32xf32> to vector<1x8x8x32xf32>
    tpu.vector_store %arg9[%c0_34, %c0_35, %c0_36, %c0_37], %73 {strides = array<i32>} : memref<1x8x8x32xf32, #tpu.memory_space<vmem>>, vector<1x8x8x32xf32>,
    return
  }
  func.func @transform_0(%arg0: i32, %arg1: i32) -> i32 {
    %c0_i32 = arith.constant 0 : i32
    %c0_i32_0 = arith.constant 0 : i32
    return %c0_i32 : i32
  }
  func.func @transform_1(%arg0: i32, %arg1: i32) -> (i32, i32, i32) {
    %c0_i32 = arith.constant 0 : i32
    %c0_i32_0 = arith.constant 0 : i32
    return %arg0, %arg1, %c0_i32 : i32, i32, i32
  }
  func.func @transform_2(%arg0: i32, %arg1: i32) -> (i32, i32, i32) {
    %c1_i32 = arith.constant 1 : i32
    %0 = arith.addi %arg1, %c1_i32 : i32
    %c8_i32 = arith.constant 8 : i32
    %1 = arith.muli %0, %c8_i32 : i32
    %c0_i32 = arith.constant 0 : i32
    %c0_i32_0 = arith.constant 0 : i32
    return %arg0, %1, %c0_i32 : i32, i32, i32
  }
  func.func @transform_3(%arg0: i32, %arg1: i32) -> (i32, i32) {
    %c0_i32 = arith.constant 0 : i32
    %c0_i32_0 = arith.constant 0 : i32
    %c0_i32_1 = arith.constant 0 : i32
    return %c0_i32, %c0_i32_0 : i32, i32
  }
  func.func @transform_4(%arg0: i32, %arg1: i32) -> (i32, i32, i32, i32) {
    %c0_i32 = arith.constant 0 : i32
    %c0_i32_0 = arith.constant 0 : i32
    %c0_i32_1 = arith.constant 0 : i32
    return %arg0, %arg1, %c0_i32, %c0_i32_0 : i32, i32, i32, i32
  }
  func.func @transform_5(%arg0: i32, %arg1: i32) -> (i32, i32, i32, i32) {
    %c0_i32 = arith.constant 0 : i32
    %c0_i32_0 = arith.constant 0 : i32
    %c0_i32_1 = arith.constant 0 : i32
    return %arg0, %arg1, %c0_i32, %c0_i32_0 : i32, i32, i32, i32
  }
  func.func @transform_6(%arg0: i32, %arg1: i32) -> (i32, i32, i32, i32) {
    %c0_i32 = arith.constant 0 : i32
    %c0_i32_0 = arith.constant 0 : i32
    %c0_i32_1 = arith.constant 0 : i32
    return %arg0, %arg1, %c0_i32, %c0_i32_0 : i32, i32, i32, i32
  }
  func.func @transform_7(%arg0: i32, %arg1: i32) -> (i32, i32, i32, i32) {
    %c0_i32 = arith.constant 0 : i32
    %c0_i32_0 = arith.constant 0 : i32
    %c0_i32_1 = arith.constant 0 : i32
    return %arg0, %arg1, %c0_i32, %c0_i32_0 : i32, i32, i32, i32
  }
}

</mosaic_0001>

<llo_original>
// kernel: forward_attention.1
$region0: #{forward_attention.1}
  #allocation0 [shape = 'u32[]', space=smem, size = 0x4, offset = 0x4, fixed_abs, tag = 'smem constant byte address 0x4 - core index']
  #allocation1 [shape = 'u32[144,128]{1,0:T(1,128)}', space=vmem, size = 0x12000, scoped, tag = 'internal scratch']
  #allocation2 [shape = 'bf16[144,28]{1,0:T(8,128)(2,1)}', space=vmem, size = 0x9000, scoped, tag = 'scratch operand']
  %s0 = inlined_call_operand.vmem [shape: f32[8], index: 0, kind: input, shape index: {}]
  %s1 = inlined_call_operand.vmem [shape: bf16[2,144,28], index: 1, kind: input, shape index: {}, may-alias: {1,2}]
  %s2 = inlined_call_operand.vmem [shape: bf16[2,144,28], index: 2, kind: input, shape index: {}, may-alias: {1,2}]
  %s3 = inlined_call_operand.vmem [shape: bf16[28,256], index: 3, kind: input, shape index: {}]
  %s4 = inlined_call_operand.hbm [shape: f32[2,8,8,32], index: 4, kind: output, shape index: {0}]
  %s5 = inlined_call_operand.hbm [shape: f32[2,8,8,32], index: 5, kind: output, shape index: {1}]
  %s6 = inlined_call_operand.hbm [shape: f32[2,8,8,32], index: 6, kind: output, shape index: {2}]
  %s7 = inlined_call_operand.hbm [shape: f32[2,8,8,32], index: 7, kind: output, shape index: {3}]
  %8 = xla_tuple %s4, %s5, %s6, %s7
  %s9 = sld [smem:[#allocation0]]
  $region77: #{forward_attention.1} parent=0
    _
  %s11 = ssub.s32 1, %s9
  %s12 = scalar_select 0, %s11, %s9
  $region1: #{forward_attention.1} parent=0
    #allocation3 [shape = 'u8[512]{0}', space=smem, size = 0x200, scoped, tag = 'input window, operand 0, single buffered']
    #allocation4 [shape = 's32[2]{0}', space=sflag, size = 0x8, scoped, tag = 'scoped memory for forward_attention.1']
    #allocation5 [shape = 's32[2]{0}', space=sflag, size = 0x8, scoped, tag = 'scoped memory for forward_attention.1']
    #allocation6 [shape = 'u8[65536]{0}', space=vmem, size = 0x10000, scoped, tag = 'output window, operand 0']
    #allocation7 [shape = 'u8[65536]{0}', space=vmem, size = 0x10000, scoped, tag = 'output window, operand 1']
    #allocation8 [shape = 's32[2]{0}', space=sflag, size = 0x8, scoped, tag = 'scoped memory for forward_attention.1']
    #allocation9 [shape = 'u8[65536]{0}', space=vmem, size = 0x10000, scoped, tag = 'output window, operand 2']
    #allocation10 [shape = 'u8[65536]{0}', space=vmem, size = 0x10000, scoped, tag = 'output window, operand 3']
    #allocation11 [shape = 's32[2]{0}', space=sflag, size = 0x8, scoped, tag = 'scoped memory for forward_attention.1']
    %13 = vsyncpa [#allocation5], 0
    %14 = vsyncpa [#allocation4], 0
    %s15 = scalar_lea.sflag [#allocation4], 1
    %16 = vsyncpa %s15, 0
    %17 = vsyncpa [#allocation8], 0
    %s18 = scalar_lea.sflag [#allocation8], 1
    %19 = vsyncpa %s18, 0
    %20 = vsyncpa [#allocation11], 0
    %s21 = scalar_lea.sflag [#allocation11], 1
    %22 = vsyncpa %s21, 0
    loop: start=0, step=1, limit=4
    $region2: #{forward_attention.1} parent=1 // loop_pre_header
      _
    $region3: #{forward_attention.1} parent=1 // loop_header
      %s24 = sphi 0, %s28
      %p25 = scmp.ge.s32.totalorder %s24, 4
      %s31 = sphi 0, %s43
      %s32 = sphi 0, %s39
      %s33 = sphi 0, %s31
      %s34 = sphi 0, %s32
      %s35 = sphi 0, %s33
      %s36 = sphi 0, %s34
      %s44 = sphi 0, %s44
      %s46 = sphi 0, %s44
      %s47 = sphi 0, %s46
      %s61 = sphi 0, %s47
      %s69 = sphi 0, %s71
      %s72 = sphi 0, %s69
      %s73 = sphi 0, %s72
      %s89 = sphi 0, %s73
      %s101 = sphi 0, %s103
      %s104 = sphi 0, %s101
      %s105 = sphi 0, %s104
      %s121 = sphi 0, %s105
      %s125 = sphi 0, %s125
      %s127 = sphi 0, %s125
      %s128 = sphi 0, %s127
      %s142 = sphi 0, %s128
      %s150 = sphi 0, %s152
      %s153 = sphi 0, %s150
      %s154 = sphi 0, %s153
      %s170 = sphi 0, %s154
      %s178 = sphi 0, %s180
      %s181 = sphi 0, %s178
      %s182 = sphi 0, %s181
      %s198 = sphi 0, %s182
      %s206 = sphi 0, %s208
      %s209 = sphi 0, %s206
      %s210 = sphi 0, %s209
      %s226 = sphi 0, %s210
      %s234 = sphi 0, %s236
      %s237 = sphi 0, %s234
      %s238 = sphi 0, %s237
      %s254 = sphi 0, %s238
    $region4: #{forward_attention.1} parent=1 // loop_header_branch
      %27 = sbr.rel (%p25) target = $region8
    $region5: #{forward_attention.1} parent=1 // loop_body
      %s29 = ssub.s32 %s24, 1
      %s30 = ssub.s32 %s24, 2
      %s37 = sadd.s32 1, %s32
      %p38 = scmp.ge.s32.totalorder %s37, 1
      %s39 = scalar_select %p38, 0, %s37
      %s40 = sadd.s32 1, %s31
      %s41 = scalar_select %p38, %s40, %s31
      %p42 = scmp.ge.s32.totalorder %s41, 2
      %s43 = scalar_select %p42, 0, %s41
      %s45 = sadd.s32 %s44, 1
      %p48 = scmp.eq.s32.totalorder %s24, 1
      %p49 = scmp.ne.s32.totalorder %s44, %s46
      %p50 = scmp.eq.s32.totalorder %s24, 0
      %p51 = por %p49, %p50
      %p52 = scmp.ne.s32.totalorder %s44, %s46
      %p53 = scmp.eq.s32.totalorder %s29, 1
      %p54 = por %p52, %p53
      %p55 = scmp.ne.s32.totalorder %s46, %s47
      %p56 = scmp.eq.s32.totalorder %s29, 0
      %p57 = por %p55, %p56
      %p58 = scmp.ne.s32.totalorder %s46, %s47
      %p59 = scmp.eq.s32.totalorder %s30, 1
      %p60 = por %p58, %p59
      %p62 = scmp.ne.s32.totalorder %s47, %s61
      %p63 = scmp.eq.s32.totalorder %s30, 0
      %p64 = por %p62, %p63
      %s65 = ssub.s32 %s31, %s43
      %s66 = ssub.s32 %s32, %s39
      %s67 = sor.u32 %s65, %s66
      %p68 = scmp.eq.s32.totalorder %s67, 0
      %s70 = sadd.s32 %s69, 1
      %s71 = scalar_select %p68, %s69, %s70
      %p74 = pneg %p68
      %p75 = scmp.eq.s32.totalorder %s24, 1
      %p76 = por %p74, %p75
      %p77 = scmp.ne.s32.totalorder %s69, %s72
      %p78 = scmp.eq.s32.totalorder %s24, 0
      %p79 = por %p77, %p78
      %p80 = scmp.ne.s32.totalorder %s69, %s72
      %p81 = scmp.eq.s32.totalorder %s29, 1
      %p82 = por %p80, %p81
      %p83 = scmp.ne.s32.totalorder %s72, %s73
      %p84 = scmp.eq.s32.totalorder %s29, 0
      %p85 = por %p83, %p84
      %p86 = scmp.ne.s32.totalorder %s72, %s73
      %p87 = scmp.eq.s32.totalorder %s30, 1
      %p88 = por %p86, %p87
      %p90 = scmp.ne.s32.totalorder %s73, %s89
      %p91 = scmp.eq.s32.totalorder %s30, 0
      %p92 = por %p90, %p91
      %s93 = sadd.s32 %s32, 1
      %s94 = smul.u32 %s93, 8
      %s95 = sadd.s32 %s39, 1
      %s96 = smul.u32 %s95, 8
      %s97 = ssub.s32 %s31, %s43
      %s98 = ssub.s32 %s94, %s96
      %s99 = sor.u32 %s97, %s98
      %p100 = scmp.eq.s32.totalorder %s99, 0
      %s102 = sadd.s32 %s101, 1
      %s103 = scalar_select %p100, %s101, %s102
      %p106 = pneg %p100
      %p107 = scmp.eq.s32.totalorder %s24, 1
      %p108 = por %p106, %p107
      %p109 = scmp.ne.s32.totalorder %s101, %s104
      %p110 = scmp.eq.s32.totalorder %s24, 0
      %p111 = por %p109, %p110
      %p112 = scmp.ne.s32.totalorder %s101, %s104
      %p113 = scmp.eq.s32.totalorder %s29, 1
      %p114 = por %p112, %p113
      %p115 = scmp.ne.s32.totalorder %s104, %s105
      %p116 = scmp.eq.s32.totalorder %s29, 0
      %p117 = por %p115, %p116
      %p118 = scmp.ne.s32.totalorder %s104, %s105
      %p119 = scmp.eq.s32.totalorder %s30, 1
      %p120 = por %p118, %p119
      %p122 = scmp.ne.s32.totalorder %s105, %s121
      %p123 = scmp.eq.s32.totalorder %s30, 0
      %p124 = por %p122, %p123
      %s126 = sadd.s32 %s125, 1
      %p129 = scmp.eq.s32.totalorder %s24, 1
      %p130 = scmp.ne.s32.totalorder %s125, %s127
      %p131 = scmp.eq.s32.totalorder %s24, 0
      %p132 = por %p130, %p131
      %p133 = scmp.ne.s32.totalorder %s125, %s127
      %p134 = scmp.eq.s32.totalorder %s29, 1
      %p135 = por %p133, %p134
      %p136 = scmp.ne.s32.totalorder %s127, %s128
      %p137 = scmp.eq.s32.totalorder %s29, 0
      %p138 = por %p136, %p137
      %p139 = scmp.ne.s32.totalorder %s127, %s128
      %p140 = scmp.eq.s32.totalorder %s30, 1
      %p141 = por %p139, %p140
      %p143 = scmp.ne.s32.totalorder %s128, %s142
      %p144 = scmp.eq.s32.totalorder %s30, 0
      %p145 = por %p143, %p144
      %s146 = ssub.s32 %s31, %s43
      %s147 = ssub.s32 %s32, %s39
      %s148 = sor.u32 %s146, %s147
      %p149 = scmp.eq.s32.totalorder %s148, 0
      %s151 = sadd.s32 %s150, 1
      %s152 = scalar_select %p149, %s150, %s151
      %p155 = pneg %p149
      %p156 = scmp.eq.s32.totalorder %s24, 1
      %p157 = por %p155, %p156
      %p158 = scmp.ne.s32.totalorder %s150, %s153
      %p159 = scmp.eq.s32.totalorder %s24, 0
      %p160 = por %p158, %p159
      %p161 = scmp.ne.s32.totalorder %s150, %s153
      %p162 = scmp.eq.s32.totalorder %s29, 1
      %p163 = por %p161, %p162
      %p164 = scmp.ne.s32.totalorder %s153, %s154
      %p165 = scmp.eq.s32.totalorder %s29, 0
      %p166 = por %p164, %p165
      %p167 = scmp.ne.s32.totalorder %s153, %s154
      %p168 = scmp.eq.s32.totalorder %s30, 1
      %p169 = por %p167, %p168
      %p171 = scmp.ne.s32.totalorder %s154, %s170
      %p172 = scmp.eq.s32.totalorder %s30, 0
      %p173 = por %p171, %p172
      %s174 = ssub.s32 %s31, %s43
      %s175 = ssub.s32 %s32, %s39
      %s176 = sor.u32 %s174, %s175
      %p177 = scmp.eq.s32.totalorder %s176, 0
      %s179 = sadd.s32 %s178, 1
      %s180 = scalar_select %p177, %s178, %s179
      %p183 = pneg %p177
      %p184 = scmp.eq.s32.totalorder %s24, 1
      %p185 = por %p183, %p184
      %p186 = scmp.ne.s32.totalorder %s178, %s181
      %p187 = scmp.eq.s32.totalorder %s24, 0
      %p188 = por %p186, %p187
      %p189 = scmp.ne.s32.totalorder %s178, %s181
      %p190 = scmp.eq.s32.totalorder %s29, 1
      %p191 = por %p189, %p190
      %p192 = scmp.ne.s32.totalorder %s181, %s182
      %p193 = scmp.eq.s32.totalorder %s29, 0
      %p194 = por %p192, %p193
      %p195 = scmp.ne.s32.totalorder %s181, %s182
      %p196 = scmp.eq.s32.totalorder %s30, 1
      %p197 = por %p195, %p196
      %p199 = scmp.ne.s32.totalorder %s182, %s198
      %p200 = scmp.eq.s32.totalorder %s30, 0
      %p201 = por %p199, %p200
      %s202 = ssub.s32 %s31, %s43
      %s203 = ssub.s32 %s32, %s39
      %s204 = sor.u32 %s202, %s203
      %p205 = scmp.eq.s32.totalorder %s204, 0
      %s207 = sadd.s32 %s206, 1
      %s208 = scalar_select %p205, %s206, %s207
      %p211 = pneg %p205
      %p212 = scmp.eq.s32.totalorder %s24, 1
      %p213 = por %p211, %p212
      %p214 = scmp.ne.s32.totalorder %s206, %s209
      %p215 = scmp.eq.s32.totalorder %s24, 0
      %p216 = por %p214, %p215
      %p217 = scmp.ne.s32.totalorder %s206, %s209
      %p218 = scmp.eq.s32.totalorder %s29, 1
      %p219 = por %p217, %p218
      %p220 = scmp.ne.s32.totalorder %s209, %s210
      %p221 = scmp.eq.s32.totalorder %s29, 0
      %p222 = por %p220, %p221
      %p223 = scmp.ne.s32.totalorder %s209, %s210
      %p224 = scmp.eq.s32.totalorder %s30, 1
      %p225 = por %p223, %p224
      %p227 = scmp.ne.s32.totalorder %s210, %s226
      %p228 = scmp.eq.s32.totalorder %s30, 0
      %p229 = por %p227, %p228
      %s230 = ssub.s32 %s31, %s43
      %s231 = ssub.s32 %s32, %s39
      %s232 = sor.u32 %s230, %s231
      %p233 = scmp.eq.s32.totalorder %s232, 0
      %s235 = sadd.s32 %s234, 1
      %s236 = scalar_select %p233, %s234, %s235
      %p239 = pneg %p233
      %p240 = scmp.eq.s32.totalorder %s24, 1
      %p241 = por %p239, %p240
      %p242 = scmp.ne.s32.totalorder %s234, %s237
      %p243 = scmp.eq.s32.totalorder %s24, 0
      %p244 = por %p242, %p243
      %p245 = scmp.ne.s32.totalorder %s234, %s237
      %p246 = scmp.eq.s32.totalorder %s29, 1
      %p247 = por %p245, %p246
      %p248 = scmp.ne.s32.totalorder %s237, %s238
      %p249 = scmp.eq.s32.totalorder %s29, 0
      %p250 = por %p248, %p249
      %p251 = scmp.ne.s32.totalorder %s237, %s238
      %p252 = scmp.eq.s32.totalorder %s30, 1
      %p253 = por %p251, %p252
      %p255 = scmp.ne.s32.totalorder %s238, %s254
      %p256 = scmp.eq.s32.totalorder %s30, 0
      %p257 = por %p255, %p256
      %p258 = scmp.le.s32.totalorder 1, %s24
      %p259 = scmp.lt.s32.totalorder %s24, 3
      %p260 = pnand %p258, %p259
      %p261 = pneg %p260
      // Predicated region
      $region9: #{forward_attention.1} parent=5 // pred_check
        _
      $region10: #{forward_attention.1} parent=5 // pred_check_branch
        %263 = sbr.rel (%p260) target = $region12
      $region11: #{forward_attention.1} parent=5 // pred_region
        %s264 = ssub.s32 %s24, 1
        // Predicated region
        $region13: #{forward_attention.1} parent=11 // pred_check
          %p265 = pneg %p57
        $region14: #{forward_attention.1} parent=11 // pred_check_branch
          %267 = sbr.rel (%p265) target = $region16
        $region15: #{forward_attention.1} parent=11 // pred_region
          %s269 = ssub.s32 16, 16
          %270 = vsyncadd [#allocation5], %s269
          %s272 = sshll.u32 %s0, 4
          %s273 = int_to_ptr.vmem [resolvable:$true] %s272
          %275 = dma.vmem_to_smem %s273, 16, [#allocation3], [#allocation5]
        $region16: #{forward_attention.1} parent=11 // pred_fallthru
          _
        // Predicated region
        $region17: #{forward_attention.1} parent=11 // pred_check
          %p276 = pneg %p138
        $region18: #{forward_attention.1} parent=11 // pred_check_branch
          %278 = sbr.rel (%p276) target = $region20
        $region19: #{forward_attention.1} parent=11 // pred_region
          _
        $region20: #{forward_attention.1} parent=11 // pred_fallthru
          _
      $region12: #{forward_attention.1} parent=5 // pred_fallthru
        _
      %p279 = scmp.lt.s32.totalorder %s24, 2
      // Predicated region
      $region21: #{forward_attention.1} parent=5 // pred_check
        %p280 = pneg %p279
      $region22: #{forward_attention.1} parent=5 // pred_check_branch
        %282 = sbr.rel (%p280) target = $region24
      $region23: #{forward_attention.1} parent=5 // pred_region
        // Predicated region
        $region25: #{forward_attention.1} parent=23 // pred_check
          %p283 = pneg %p79
        $region26: #{forward_attention.1} parent=23 // pred_check_branch
          %285 = sbr.rel (%p283) target = $region28
        $region27: #{forward_attention.1} parent=23 // pred_region
          %s286 = smul.u32 16, %s32
          %s287 = ssub.s32 18, %s286
          %p288 = scmp.lt.s32.totalorder %s287, 16
          %s289 = scalar_select %p288, %s287, 16
          %s290 = smul.u32 64, %s289
          %p291 = scmp.lt.s32.totalorder %s31, 1
          %s292 = scalar_select %p291, %s31, 1
          %p293 = scmp.lt.s32.totalorder %s286, 17
          %s294 = scalar_select %p293, %s286, 17
          %s295 = smul.addr %s292, 18
          %s296 = sadd.s32 %s294, %s295
          %s297 = smul.addr %s296, 4
          %s298 = scalar_lea.vmem %s1, %s297
          %s299 = smul.u32 16, %s32
          %s300 = ssub.s32 18, %s299
          %p301 = scmp.lt.s32.totalorder %s300, 16
          %s302 = scalar_select %p301, %s300, 16
          %s303 = smul.u32 64, %s302
        $region28: #{forward_attention.1} parent=23 // pred_fallthru
          _
        // Predicated region
        $region29: #{forward_attention.1} parent=23 // pred_check
          %p304 = pneg %p111
        $region30: #{forward_attention.1} parent=23 // pred_check_branch
          %306 = sbr.rel (%p304) target = $region32
        $region31: #{forward_attention.1} parent=23 // pred_region
          %s307 = sadd.s32 %s32, 1
          %s308 = smul.u32 %s307, 8
          %s309 = smul.u32 2, %s308
          %p310 = scmp.lt.s32.totalorder %s31, 1
          %s311 = scalar_select %p310, %s31, 1
          %p312 = scmp.lt.s32.totalorder %s309, 17
          %s313 = scalar_select %p312, %s309, 17
          %s314 = smul.addr %s311, 18
          %s315 = sadd.s32 %s313, %s314
          %s316 = smul.addr %s315, 4
          %s317 = scalar_lea.vmem %s2, %s316
          %s318 = sadd.s32 %s32, 1
          %s319 = smul.u32 %s318, 8
          %s320 = smul.u32 2, %s319
        $region32: #{forward_attention.1} parent=23 // pred_fallthru
          _
      $region24: #{forward_attention.1} parent=5 // pred_fallthru
        _
      %p321 = scmp.le.s32.totalorder 1, %s24
      %p322 = scmp.lt.s32.totalorder %s24, 3
      %p323 = pnand %p321, %p322
      %p324 = pneg %p323
      // Predicated region
      $region33: #{forward_attention.1} parent=5 // pred_check
        _
      $region34: #{forward_attention.1} parent=5 // pred_check_branch
        %326 = sbr.rel (%p323) target = $region36
      $region35: #{forward_attention.1} parent=5 // pred_region
        %s327 = ssub.s32 %s24, 1
        // Predicated region
        $region37: #{forward_attention.1} parent=35 // pred_check
          %p328 = pneg %p57
        $region38: #{forward_attention.1} parent=35 // pred_check_branch
          %330 = sbr.rel (%p328) target = $region40
        $region39: #{forward_attention.1} parent=35 // pred_region
          %331 = dma.done [#allocation5], 16
        $region40: #{forward_attention.1} parent=35 // pred_fallthru
          _
        %332 = sfence
        %p333 = pneg %p57
        %p334 = pneg %p54
        %s335 = smul.u32 16, %s34
        %s336 = ssub.s32 18, %s335
        %p337 = scmp.lt.s32.totalorder %s336, 16
        %s338 = scalar_select %p337, %s336, 16
        %s339 = smul.u32 64, %s338
        %p340 = scmp.lt.s32.totalorder %s33, 1
        %s341 = scalar_select %p340, %s33, 1
        %p342 = scmp.lt.s32.totalorder %s335, 17
        %s343 = scalar_select %p342, %s335, 17
        %s344 = smul.addr %s341, 18
        %s345 = sadd.s32 %s343, %s344
        %s346 = smul.addr %s345, 4
        %s347 = scalar_lea.vmem %s1, %s346
        %p348 = pneg %p85
        %p349 = pneg %p82
        %s350 = sadd.s32 %s34, 1
        %s351 = smul.u32 %s350, 8
        %s352 = smul.u32 2, %s351
        %p353 = scmp.lt.s32.totalorder %s33, 1
        %s354 = scalar_select %p353, %s33, 1
        %p355 = scmp.lt.s32.totalorder %s352, 17
        %s356 = scalar_select %p355, %s352, 17
        %s357 = smul.addr %s354, 18
        %s358 = sadd.s32 %s356, %s357
        %s359 = smul.addr %s358, 4
        %s360 = scalar_lea.vmem %s2, %s359
        %p361 = pneg %p117
        %p362 = pneg %p114
        %p363 = pneg %p138
        %p364 = pneg %p135
        %p365 = pneg %p166
        %p366 = pneg %p163
        %s367 = sand.u32 %s153, 1
        %s368 = scalar_lea.sflag [#allocation4], %s367
        %s369 = sand.u32 %s153, 1
        %s370 = smul.addr %s369, 64
        %s371 = scalar_lea.vmem [#allocation6], %s370
        %p372 = pneg %p194
        %p373 = pneg %p191
        %s374 = sand.u32 %s29, 1
        %s375 = scalar_lea.sflag [#allocation8], %s374
        %s376 = sand.u32 %s181, 1
        %s377 = smul.addr %s376, 64
        %s378 = scalar_lea.vmem [#allocation7], %s377
        %p379 = pneg %p222
        %p380 = pneg %p219
        %s381 = sand.u32 %s29, 1
        %s382 = scalar_lea.sflag [#allocation8], %s381
        %s383 = sand.u32 %s209, 1
        %s384 = smul.addr %s383, 64
        %s385 = scalar_lea.vmem [#allocation9], %s384
        %p386 = pneg %p250
        %p387 = pneg %p247
        %s388 = sand.u32 %s237, 1
        %s389 = scalar_lea.sflag [#allocation11], %s388
        %s390 = sand.u32 %s237, 1
        %s391 = smul.addr %s390, 64
        %s392 = scalar_lea.vmem [#allocation10], %s391
        %s393 = smul.u32 16, %s34
        %s394 = ssub.s32 18, %s393
        %p395 = scmp.lt.s32.totalorder %s394, 16
        %s396 = scalar_select %p395, %s394, 16
        %s397 = smul.u32 64, %s396
        %p398 = scmp.lt.s32.totalorder %s33, 1
        %s399 = scalar_select %p398, %s33, 1
        %p400 = scmp.lt.s32.totalorder %s393, 17
        %s401 = scalar_select %p400, %s393, 17
        %s402 = smul.addr %s399, 18
        %s403 = sadd.s32 %s401, %s402
        %s404 = smul.addr %s403, 4
        %s405 = scalar_lea.vmem %s1, %s404
        %s406 = smul.u32 16, %s34
        %s407 = ssub.s32 18, %s406
        %p408 = scmp.lt.s32.totalorder %s407, 16
        %s409 = scalar_select %p408, %s407, 16
        %s410 = smul.u32 64, %s409
        %s411 = sadd.s32 %s34, 1
        %s412 = smul.u32 %s411, 8
        %s413 = smul.u32 2, %s412
        %p414 = scmp.lt.s32.totalorder %s33, 1
        %s415 = scalar_select %p414, %s33, 1
        %p416 = scmp.lt.s32.totalorder %s413, 17
        %s417 = scalar_select %p416, %s413, 17
        %s418 = smul.addr %s415, 18
        %s419 = sadd.s32 %s417, %s418
        %s420 = smul.addr %s419, 4
        %s421 = scalar_lea.vmem %s2, %s420
        %s422 = sadd.s32 %s34, 1
        %s423 = smul.u32 %s422, 8
        %s424 = smul.u32 2, %s423
        %s425 = smul.u32 8, %s34
        %s426 = smul.u32 8, %s34
        %s427 = smul.u32 8, %s34
        %s428 = smul.u32 8, %s34
        %v430 = vld [vmem:[%s405] sm:$0xf]
        %v431 = vld [vmem:[%s405 + $0x4] sm:$0xf]
        %v432 = vld [vmem:[%s405 + $0x8] sm:$0xf]
        %v433 = vld [vmem:[%s405 + $0xc] sm:$0xf]
        %v434 = vld [vmem:[%s405 + $0x10] sm:$0xf]
        %v435 = vld [vmem:[%s405 + $0x14] sm:$0xf]
        %v436 = vld [vmem:[%s405 + $0x18] sm:$0xf]
        %v437 = vld [vmem:[%s405 + $0x1c] sm:$0xf]
        %v438 = vld [vmem:[%s405 + $0x20] sm:$0xf]
        %v439 = vld [vmem:[%s405 + $0x24] sm:$0xf]
        %v440 = vld [vmem:[%s405 + $0x28] sm:$0xf]
        %v441 = vld [vmem:[%s405 + $0x2c] sm:$0xf]
        %v442 = vld [vmem:[%s405 + $0x30] sm:$0xf]
        %v443 = vld [vmem:[%s405 + $0x34] sm:$0xf]
        %v444 = vld [vmem:[%s405 + $0x38] sm:$0xf]
        %v445 = vld [vmem:[%s405 + $0x3c] sm:$0xf]
        %vm446 = vcmask 224256
        %447 = vst.msk [vmem:[#allocation2] sm:$0xf] %vm446, %v430
        %448 = vst.msk [vmem:[#allocation2 + $0x4] sm:$0xf] %vm446, %v431
        %449 = vst.msk [vmem:[#allocation2 + $0x8] sm:$0xf] %vm446, %v432
        %450 = vst.msk [vmem:[#allocation2 + $0xc] sm:$0xf] %vm446, %v433
        %451 = vst.msk [vmem:[#allocation2 + $0x10] sm:$0xf] %vm446, %v434
        %452 = vst.msk [vmem:[#allocation2 + $0x14] sm:$0xf] %vm446, %v435
        %453 = vst.msk [vmem:[#allocation2 + $0x18] sm:$0xf] %vm446, %v436
        %454 = vst.msk [vmem:[#allocation2 + $0x1c] sm:$0xf] %vm446, %v437
        %455 = vst.msk [vmem:[#allocation2 + $0x20] sm:$0xf] %vm446, %v438
        %456 = vst.msk [vmem:[#allocation2 + $0x24] sm:$0xf] %vm446, %v439
        %457 = vst.msk [vmem:[#allocation2 + $0x28] sm:$0xf] %vm446, %v440
        %458 = vst.msk [vmem:[#allocation2 + $0x2c] sm:$0xf] %vm446, %v441
        %459 = vst.msk [vmem:[#allocation2 + $0x30] sm:$0xf] %vm446, %v442
        %460 = vst.msk [vmem:[#allocation2 + $0x34] sm:$0xf] %vm446, %v443
        %461 = vst.msk [vmem:[#allocation2 + $0x38] sm:$0xf] %vm446, %v444
        %462 = vst.msk [vmem:[#allocation2 + $0x3c] sm:$0xf] %vm446, %v445
        %v463 = vld [vmem:[%s421] sm:$0xf]
        %v464 = vld [vmem:[%s421 + $0x4] sm:$0xf]
        %465 = vst.msk [vmem:[#allocation2 + $0x40] sm:$0xf] %vm446, %v463
        %466 = vst.msk [vmem:[#allocation2 + $0x44] sm:$0xf] %vm446, %v464
        %v467 = vld [vmem:[#allocation2] sm:$0xf]
        %v468 = vld [vmem:[#allocation2 + $0x4] sm:$0xf]
        %v469 = vld [vmem:[#allocation2 + $0x8] sm:$0xf]
        %v470 = vld [vmem:[#allocation2 + $0xc] sm:$0xf]
        %v471 = vld [vmem:[#allocation2 + $0x10] sm:$0xf]
        %v472 = vld [vmem:[#allocation2 + $0x14] sm:$0xf]
        %v473 = vld [vmem:[#allocation2 + $0x18] sm:$0xf]
        %v474 = vld [vmem:[#allocation2 + $0x1c] sm:$0xf]
        %v475 = vld [vmem:[#allocation2 + $0x20] sm:$0xf]
        %v476 = vld [vmem:[#allocation2 + $0x24] sm:$0xf]
        %v477 = vld [vmem:[#allocation2 + $0x28] sm:$0xf]
        %v478 = vld [vmem:[#allocation2 + $0x2c] sm:$0xf]
        %v479 = vld [vmem:[#allocation2 + $0x30] sm:$0xf]
        %v480 = vld [vmem:[#allocation2 + $0x34] sm:$0xf]
        %v481 = vld [vmem:[#allocation2 + $0x38] sm:$0xf]
        %v482 = vld [vmem:[#allocation2 + $0x3c] sm:$0xf]
        %v483 = vld [vmem:[#allocation2 + $0x40] sm:$0xf]
        %v484 = vld [vmem:[#allocation2 + $0x44] sm:$0xf]
        %v485 = vld [vmem:[%s3] sm:$0xff]
        %v486 = vld [vmem:[%s3 + $0x8] sm:$0xff]
        %v487 = vld [vmem:[%s3 + $0x10] sm:$0xff]
        %v488 = vld [vmem:[%s3 + $0x18] sm:$0x33]
        %v507 = vunpack.c.l.b16 %v467
        %v508 = vunpack.c.l.b16 %v468
        %v509 = vunpack.c.l.b16 %v469
        %v510 = vunpack.c.l.b16 %v470
        %v511 = vunpack.c.l.b16 %v471
        %v512 = vunpack.c.l.b16 %v472
        %v513 = vunpack.c.l.b16 %v473
        %v514 = vunpack.c.l.b16 %v474
        %v515 = vunpack.c.l.b16 %v475
        %v516 = vunpack.c.l.b16 %v476
        %v517 = vunpack.c.l.b16 %v477
        %v518 = vunpack.c.l.b16 %v478
        %v519 = vunpack.c.l.b16 %v479
        %v520 = vunpack.c.l.b16 %v480
        %v521 = vunpack.c.l.b16 %v481
        %v522 = vunpack.c.l.b16 %v482
        %v523 = vunpack.c.l.b16 %v483
        %v524 = vunpack.c.l.b16 %v484
        %v525 = vpack.c.b16 %v508, %v507
        %v526 = vpack.c.b16 %v510, %v509
        %v527 = vpack.c.b16 %v512, %v511
        %v528 = vpack.c.b16 %v514, %v513
        %v529 = vpack.c.b16 %v516, %v515
        %v530 = vpack.c.b16 %v518, %v517
        %v531 = vpack.c.b16 %v520, %v519
        %v532 = vpack.c.b16 %v522, %v521
        %v533 = vpack.c.b16 %v524, %v523
        %v538 = vunpack.c.l.b16 %v485
        %v539 = vunpack.c.h.b16 %v485
        %v540 = vunpack.c.l.b16 %v486
        %v541 = vunpack.c.h.b16 %v486
        %v542 = vunpack.c.l.b16 %v487
        %v543 = vunpack.c.h.b16 %v487
        %v544 = vunpack.c.l.b16 %v488
        %v545 = vunpack.c.h.b16 %v488
        %v546 = vpack.c.b16 %v540, %v538
        %v547 = vpack.c.b16 %v541, %v539
        %v548 = vpack.c.b16 %v544, %v542
        %v549 = vpack.c.b16 %v545, %v543
        %vm552 = vcmask 228352
        %v554 = vsel %vm552, %v525, 0
        %v557 = vsel %vm552, %v526, 0
        %v560 = vsel %vm552, %v527, 0
        %v563 = vsel %vm552, %v528, 0
        %v566 = vsel %vm552, %v529, 0
        %v569 = vsel %vm552, %v530, 0
        %v572 = vsel %vm552, %v531, 0
        %v575 = vsel %vm552, %v532, 0
        %v578 = vsel %vm552, %v533, 0
        %vm580 = vcmask 1045504
        %v582 = vsel %vm580, %v548, 0
        %v585 = vsel %vm580, %v549, 0
        %587 = vmatprep.subr.bf16.mxu0 0
        %588 = vmatpush1.bf16.msra.mxu0 0
        %589 = vmatprep.subr.bf16.mxu0 0
        %590 = vmatpush1.bf16.msra.mxu0 0
        %591 = vmatprep.subr.bf16.mxu0 0
        %592 = vmatpush1.bf16.msra.mxu0 0
        %593 = vmatprep.subr.bf16.mxu0 0
        %594 = vmatpush1.bf16.msra.mxu0 0
        %595 = vmatprep.subr.bf16.mxu0 0
        %596 = vmatpush1.bf16.msra.mxu0 0
        %597 = vmatprep.subr.bf16.mxu0 0
        %598 = vmatpush1.bf16.msra.mxu0 0
        %599 = vmatprep.subr.bf16.mxu0 %v585
        %600 = vmatpush1.bf16.msra.mxu0 %v582
        %601 = vmatprep.subr.bf16.mxu0 %v547
        %602 = vmatpush1.bf16.msra.mxu0 %v546
        %603 = vmatprep.subr.bf16.mxu0 0
        %604 = vmatpush2.bf16.msra.mxu0 0
        %605 = vmatprep.subr.bf16.mxu0 0
        %606 = vmatpush2.bf16.msra.mxu0 0
        %607 = vmatprep.subr.bf16.mxu0 0
        %608 = vmatpush2.bf16.msra.mxu0 0
        %609 = vmatprep.subr.bf16.mxu0 0
        %610 = vmatpush2.bf16.msra.mxu0 0
        %611 = vmatprep.subr.bf16.mxu0 0
        %612 = vmatpush2.bf16.msra.mxu0 0
        %613 = vmatprep.subr.bf16.mxu0 0
        %614 = vmatpush2.bf16.msra.mxu0 0
        %615 = vmatprep.subr.bf16.mxu0 0
        %616 = vmatpush2.bf16.msra.mxu0 0
        %617 = vmatprep.subr.bf16.mxu0 0
        %618 = vmatpush2.bf16.msra.mxu0 0
        %619 = vmatprep.mubr.bf16.mxu0 0
        %620 = vmatmul.mubr.bf16.gmra.mxu0 %v554
        %v621 = vpop.f32.mrf.mxu0
        %v622 = vadd.f32 0.0, %v621
        %v623 = vpop.f32.mrf.mxu0
        %v624 = vpop.f32.mrf.mxu0
        %v625 = vadd.f32 0.0, %v624
        %v626 = vpop.f32.mrf.mxu0
        %627 = vmatprep.mubr.bf16.mxu0 0
        %628 = vmatmul.mubr.bf16.gmra.mxu0 %v557
        %v629 = vpop.f32.mrf.mxu0
        %v630 = vadd.f32 0.0, %v629
        %v631 = vpop.f32.mrf.mxu0
        %v632 = vadd.f32 0.0, %v631
        %v633 = vpop.f32.mrf.mxu0
        %v634 = vadd.f32 0.0, %v633
        %v635 = vpop.f32.mrf.mxu0
        %v636 = vadd.f32 0.0, %v635
        %637 = vmatprep.mubr.bf16.mxu0 0
        %638 = vmatmul.mubr.bf16.gmra.mxu0 %v560
        %v639 = vpop.f32.mrf.mxu0
        %v640 = vadd.f32 0.0, %v639
        %v641 = vpop.f32.mrf.mxu0
        %v642 = vadd.f32 0.0, %v641
        %v643 = vpop.f32.mrf.mxu0
        %v644 = vadd.f32 0.0, %v643
        %v645 = vpop.f32.mrf.mxu0
        %v646 = vadd.f32 0.0, %v645
        %647 = vmatprep.mubr.bf16.mxu0 0
        %648 = vmatmul.mubr.bf16.gmra.mxu0 %v563
        %v649 = vpop.f32.mrf.mxu0
        %v650 = vadd.f32 0.0, %v649
        %v651 = vpop.f32.mrf.mxu0
        %v652 = vadd.f32 0.0, %v651
        %v653 = vpop.f32.mrf.mxu0
        %v654 = vadd.f32 0.0, %v653
        %v655 = vpop.f32.mrf.mxu0
        %v656 = vadd.f32 0.0, %v655
        %657 = vmatprep.mubr.bf16.mxu0 0
        %658 = vmatmul.mubr.bf16.gmra.mxu0 %v566
        %v659 = vpop.f32.mrf.mxu0
        %v660 = vadd.f32 0.0, %v659
        %v661 = vpop.f32.mrf.mxu0
        %v662 = vadd.f32 0.0, %v661
        %v663 = vpop.f32.mrf.mxu0
        %v664 = vadd.f32 0.0, %v663
        %v665 = vpop.f32.mrf.mxu0
        %v666 = vadd.f32 0.0, %v665
        %667 = vmatprep.mubr.bf16.mxu0 0
        %668 = vmatmul.mubr.bf16.gmra.mxu0 %v569
        %v669 = vpop.f32.mrf.mxu0
        %v670 = vadd.f32 0.0, %v669
        %v671 = vpop.f32.mrf.mxu0
        %v672 = vadd.f32 0.0, %v671
        %v673 = vpop.f32.mrf.mxu0
        %v674 = vadd.f32 0.0, %v673
        %v675 = vpop.f32.mrf.mxu0
        %v676 = vadd.f32 0.0, %v675
        %677 = vmatprep.mubr.bf16.mxu0 0
        %678 = vmatmul.mubr.bf16.gmra.mxu0 %v572
        %v679 = vpop.f32.mrf.mxu0
        %v680 = vadd.f32 0.0, %v679
        %v681 = vpop.f32.mrf.mxu0
        %v682 = vadd.f32 0.0, %v681
        %v683 = vpop.f32.mrf.mxu0
        %v684 = vadd.f32 0.0, %v683
        %v685 = vpop.f32.mrf.mxu0
        %v686 = vadd.f32 0.0, %v685
        %687 = vmatprep.mubr.bf16.mxu0 0
        %688 = vmatmul.mubr.bf16.gmra.mxu0 %v575
        %v689 = vpop.f32.mrf.mxu0
        %v690 = vadd.f32 0.0, %v689
        %v691 = vpop.f32.mrf.mxu0
        %v692 = vadd.f32 0.0, %v691
        %v693 = vpop.f32.mrf.mxu0
        %v694 = vadd.f32 0.0, %v693
        %v695 = vpop.f32.mrf.mxu0
        %v696 = vadd.f32 0.0, %v695
        %697 = vmatprep.mubr.bf16.mxu0 0
        %698 = vmatmul.mubr.bf16.gmra.mxu0 %v578
        %v699 = vpop.f32.mrf.mxu0
        %v700 = vpop.f32.mrf.mxu0
        %v701 = vadd.f32 0.0, %v700
        %v702 = vpop.f32.mrf.mxu0
        %v703 = vpop.f32.mrf.mxu0
        %v704 = vadd.f32 0.0, %v703
        %705 = vdwg.mxu0
        %vm722 = vcmask 1046528
        %v723 = vrot.slane %v622, 1
        %v724 = vrot.slane %v625, 1
        %v725 = vsel %vm722, %v723, %v724
        %v726 = vrot.slane %v630, 1
        %v727 = vrot.slane %v634, 1
        %v728 = vsel %vm722, %v726, %v727
        %v729 = vrot.slane %v640, 1
        %v730 = vrot.slane %v644, 1
        %v731 = vsel %vm722, %v729, %v730
        %v732 = vrot.slane %v650, 1
        %v733 = vrot.slane %v654, 1
        %v734 = vsel %vm722, %v732, %v733
        %v735 = vrot.slane %v660, 1
        %v736 = vrot.slane %v664, 1
        %v737 = vsel %vm722, %v735, %v736
        %v738 = vrot.slane %v670, 1
        %v739 = vrot.slane %v674, 1
        %v740 = vsel %vm722, %v738, %v739
        %v741 = vrot.slane %v680, 1
        %v742 = vrot.slane %v684, 1
        %v743 = vsel %vm722, %v741, %v742
        %v744 = vrot.slane %v690, 1
        %v745 = vrot.slane %v694, 1
        %v746 = vsel %vm722, %v744, %v745
        %747 = vrot.lane.b32.xlu0 %v725, 64
        %v748 = vpop.permute.xlu0 %747
        %749 = vrot.lane.b32.xlu0 %v728, 64
        %v750 = vpop.permute.xlu0 %749
        %751 = vrot.lane.b32.xlu0 %v731, 64
        %v752 = vpop.permute.xlu0 %751
        %753 = vrot.lane.b32.xlu0 %v734, 64
        %v754 = vpop.permute.xlu0 %753
        %755 = vrot.lane.b32.xlu0 %v737, 64
        %v756 = vpop.permute.xlu0 %755
        %757 = vrot.lane.b32.xlu0 %v740, 64
        %v758 = vpop.permute.xlu0 %757
        %759 = vrot.lane.b32.xlu0 %v743, 64
        %v760 = vpop.permute.xlu0 %759
        %761 = vrot.lane.b32.xlu0 %v746, 64
        %v762 = vpop.permute.xlu0 %761
        %v771 = vadd.f32 %v622, %v748
        %v772 = vadd.f32 %v630, %v750
        %v773 = vadd.f32 %v640, %v752
        %v774 = vadd.f32 %v650, %v754
        %v775 = vadd.f32 %v660, %v756
        %v776 = vadd.f32 %v670, %v758
        %v777 = vadd.f32 %v680, %v760
        %v778 = vadd.f32 %v690, %v762
        %v779 = vadd.f32 %v771, %v632
        %v780 = vadd.f32 %v772, %v642
        %v781 = vadd.f32 %v773, %v652
        %v782 = vadd.f32 %v774, %v662
        %v783 = vadd.f32 %v775, %v672
        %v784 = vadd.f32 %v776, %v682
        %v785 = vadd.f32 %v777, %v692
        %v786 = vadd.f32 %v778, %v701
        %v803 = vrot.slane %v632, 1
        %v804 = vrot.slane %v636, 1
        %v805 = vsel %vm722, %v803, %v804
        %v806 = vrot.slane %v642, 1
        %v807 = vrot.slane %v646, 1
        %v808 = vsel %vm722, %v806, %v807
        %v809 = vrot.slane %v652, 1
        %v810 = vrot.slane %v656, 1
        %v811 = vsel %vm722, %v809, %v810
        %v812 = vrot.slane %v662, 1
        %v813 = vrot.slane %v666, 1
        %v814 = vsel %vm722, %v812, %v813
        %v815 = vrot.slane %v672, 1
        %v816 = vrot.slane %v676, 1
        %v817 = vsel %vm722, %v815, %v816
        %v818 = vrot.slane %v682, 1
        %v819 = vrot.slane %v686, 1
        %v820 = vsel %vm722, %v818, %v819
        %v821 = vrot.slane %v692, 1
        %v822 = vrot.slane %v696, 1
        %v823 = vsel %vm722, %v821, %v822
        %v824 = vrot.slane %v701, 1
        %v825 = vrot.slane %v704, 1
        %v826 = vsel %vm722, %v824, %v825
        %827 = vrot.lane.b32.xlu0 %v805, 64
        %v828 = vpop.permute.xlu0 %827
        %829 = vrot.lane.b32.xlu0 %v808, 64
        %v830 = vpop.permute.xlu0 %829
        %831 = vrot.lane.b32.xlu0 %v811, 64
        %v832 = vpop.permute.xlu0 %831
        %833 = vrot.lane.b32.xlu0 %v814, 64
        %v834 = vpop.permute.xlu0 %833
        %835 = vrot.lane.b32.xlu0 %v817, 64
        %v836 = vpop.permute.xlu0 %835
        %837 = vrot.lane.b32.xlu0 %v820, 64
        %v838 = vpop.permute.xlu0 %837
        %839 = vrot.lane.b32.xlu0 %v823, 64
        %v840 = vpop.permute.xlu0 %839
        %841 = vrot.lane.b32.xlu0 %v826, 64
        %v842 = vpop.permute.xlu0 %841
        %v851 = vadd.f32 %v779, %v828
        %v852 = vadd.f32 %v780, %v830
        %v853 = vadd.f32 %v781, %v832
        %v854 = vadd.f32 %v782, %v834
        %v855 = vadd.f32 %v783, %v836
        %v856 = vadd.f32 %v784, %v838
        %v857 = vadd.f32 %v785, %v840
        %v858 = vadd.f32 %v786, %v842
        %s859 = sld [smem:[#allocation3]]
        %s860 = sld [smem:[#allocation3 + $0x1]]
        %s861 = sld [smem:[#allocation3 + $0x2]]
        %s862 = sld [smem:[#allocation3 + $0x3]]
        %s863 = sld [smem:[#allocation3 + $0x4]]
        %v864 = vstv %s860
        %vm865 = vcmp.lt.f32.partialorder %v851, %v864
        %vm866 = vcmp.lt.f32.partialorder %v852, %v864
        %vm867 = vcmp.lt.f32.partialorder %v853, %v864
        %vm868 = vcmp.lt.f32.partialorder %v854, %v864
        %vm869 = vcmp.lt.f32.partialorder %v855, %v864
        %vm870 = vcmp.lt.f32.partialorder %v856, %v864
        %vm871 = vcmp.lt.f32.partialorder %v857, %v864
        %vm872 = vcmp.lt.f32.partialorder %v858, %v864
        %v873 = vsub.f32 %v851, %v864
        %v874 = vsub.f32 %v852, %v864
        %v875 = vsub.f32 %v853, %v864
        %v876 = vsub.f32 %v854, %v864
        %v877 = vsub.f32 %v855, %v864
        %v878 = vsub.f32 %v856, %v864
        %v879 = vsub.f32 %v857, %v864
        %v880 = vsub.f32 %v858, %v864
        %v881 = vstv %s861
        %v882 = vstv %s862
        %v883 = vsel %vm865, %v881, %v882
        %v884 = vsel %vm866, %v881, %v882
        %v885 = vsel %vm867, %v881, %v882
        %v886 = vsel %vm868, %v881, %v882
        %v887 = vsel %vm869, %v881, %v882
        %v888 = vsel %vm870, %v881, %v882
        %v889 = vsel %vm871, %v881, %v882
        %v890 = vsel %vm872, %v881, %v882
        %v891 = vsub.f32 0.0, %v883
        %v892 = vsub.f32 0.0, %v884
        %v893 = vsub.f32 0.0, %v885
        %v894 = vsub.f32 0.0, %v886
        %v895 = vsub.f32 0.0, %v887
        %v896 = vsub.f32 0.0, %v888
        %v897 = vsub.f32 0.0, %v889
        %v898 = vsub.f32 0.0, %v890
        %v899 = vmul.f32 %v891, %v873
        %v900 = vmul.f32 %v892, %v874
        %v901 = vmul.f32 %v893, %v875
        %v902 = vmul.f32 %v894, %v876
        %v903 = vmul.f32 %v895, %v877
        %v904 = vmul.f32 %v896, %v878
        %v905 = vmul.f32 %v897, %v879
        %v906 = vmul.f32 %v898, %v880
        %v907 = vmul.f32 %v899, %v873
        %v908 = vmul.f32 %v900, %v874
        %v909 = vmul.f32 %v901, %v875
        %v910 = vmul.f32 %v902, %v876
        %v911 = vmul.f32 %v903, %v877
        %v912 = vmul.f32 %v904, %v878
        %v913 = vmul.f32 %v905, %v879
        %v914 = vmul.f32 %v906, %v880
        %v915 = vmul.f32 %v907, 1.442695
        %v916 = vpow.pop %v915
        %v917 = vmul.f32 %v908, 1.442695
        %v918 = vpow.pop %v917
        %v919 = vmul.f32 %v909, 1.442695
        %v920 = vpow.pop %v919
        %v921 = vmul.f32 %v910, 1.442695
        %v922 = vpow.pop %v921
        %v923 = vmul.f32 %v911, 1.442695
        %v924 = vpow.pop %v923
        %v925 = vmul.f32 %v912, 1.442695
        %v926 = vpow.pop %v925
        %v927 = vmul.f32 %v913, 1.442695
        %v928 = vpow.pop %v927
        %v929 = vmul.f32 %v914, 1.442695
        %v930 = vpow.pop %v929
        %v931 = vstv %s859
        %v932 = vmul.f32 %v931, %v916
        %v933 = vmul.f32 %v931, %v918
        %v934 = vmul.f32 %v931, %v920
        %v935 = vmul.f32 %v931, %v922
        %v936 = vmul.f32 %v931, %v924
        %v937 = vmul.f32 %v931, %v926
        %v938 = vmul.f32 %v931, %v928
        %v939 = vmul.f32 %v931, %v930
        %s940 = ssub.f32 %s859, 1.0
        %v941 = vstv %s940
        %v942 = vmul.f32 %v941, %v916
        %v943 = vmul.f32 %v941, %v918
        %v944 = vmul.f32 %v941, %v920
        %v945 = vmul.f32 %v941, %v922
        %v946 = vmul.f32 %v941, %v924
        %v947 = vmul.f32 %v941, %v926
        %v948 = vmul.f32 %v941, %v928
        %v949 = vmul.f32 %v941, %v930
        %v950 = vadd.f32 %v942, 1.0
        %v951 = vadd.f32 %v943, 1.0
        %v952 = vadd.f32 %v944, 1.0
        %v953 = vadd.f32 %v945, 1.0
        %v954 = vadd.f32 %v946, 1.0
        %v955 = vadd.f32 %v947, 1.0
        %v956 = vadd.f32 %v948, 1.0
        %v957 = vadd.f32 %v949, 1.0
        %v958 = vsel %vm865, %v932, %v950
        %v959 = vsel %vm866, %v933, %v951
        %v960 = vsel %vm867, %v934, %v952
        %v961 = vsel %vm868, %v935, %v953
        %v962 = vsel %vm869, %v936, %v954
        %v963 = vsel %vm870, %v937, %v955
        %v964 = vsel %vm871, %v938, %v956
        %v965 = vsel %vm872, %v939, %v957
        %974 = vrot.lane.b32.xlu0 %v958, 96
        %v975 = vpop.permute.xlu0 %974
        %976 = vrot.lane.b32.xlu0 %v959, 96
        %v977 = vpop.permute.xlu0 %976
        %978 = vrot.lane.b32.xlu0 %v960, 96
        %v979 = vpop.permute.xlu0 %978
        %980 = vrot.lane.b32.xlu0 %v961, 96
        %v981 = vpop.permute.xlu0 %980
        %982 = vrot.lane.b32.xlu0 %v962, 96
        %v983 = vpop.permute.xlu0 %982
        %984 = vrot.lane.b32.xlu0 %v963, 96
        %v985 = vpop.permute.xlu0 %984
        %986 = vrot.lane.b32.xlu0 %v964, 96
        %v987 = vpop.permute.xlu0 %986
        %988 = vrot.lane.b32.xlu0 %v965, 96
        %v989 = vpop.permute.xlu0 %988
        %v998 = vmul.f32 %v851, %v975
        %v999 = vmul.f32 %v852, %v977
        %v1000 = vmul.f32 %v853, %v979
        %v1001 = vmul.f32 %v854, %v981
        %v1002 = vmul.f32 %v855, %v983
        %v1003 = vmul.f32 %v856, %v985
        %v1004 = vmul.f32 %v857, %v987
        %v1005 = vmul.f32 %v858, %v989
        %v1006 = vmax.f32 %v851, 0.0
        %v1007 = vmax.f32 %v852, 0.0
        %v1008 = vmax.f32 %v853, 0.0
        %v1009 = vmax.f32 %v854, 0.0
        %v1010 = vmax.f32 %v855, 0.0
        %v1011 = vmax.f32 %v856, 0.0
        %v1012 = vmax.f32 %v857, 0.0
        %v1013 = vmax.f32 %v858, 0.0
        %vm1014 = vcmp.gt.f32.partialorder %v1006, 0.0
        %vm1015 = vcmp.gt.f32.partialorder %v1007, 0.0
        %vm1016 = vcmp.gt.f32.partialorder %v1008, 0.0
        %vm1017 = vcmp.gt.f32.partialorder %v1009, 0.0
        %vm1018 = vcmp.gt.f32.partialorder %v1010, 0.0
        %vm1019 = vcmp.gt.f32.partialorder %v1011, 0.0
        %vm1020 = vcmp.gt.f32.partialorder %v1012, 0.0
        %vm1021 = vcmp.gt.f32.partialorder %v1013, 0.0
        %v1022 = vmax.f32 %v1006, 1e-30
        %v1023 = vmax.f32 %v1007, 1e-30
        %v1024 = vmax.f32 %v1008, 1e-30
        %v1025 = vmax.f32 %v1009, 1e-30
        %v1026 = vmax.f32 %v1010, 1e-30
        %v1027 = vmax.f32 %v1011, 1e-30
        %v1028 = vmax.f32 %v1012, 1e-30
        %v1029 = vmax.f32 %v1013, 1e-30
        %v1030 = vlog2.pop %v1022
        %v1031 = vmul.f32 %v1030, 0.6931472
        %v1032 = vlog2.pop %v1023
        %v1033 = vmul.f32 %v1032, 0.6931472
        %v1034 = vlog2.pop %v1024
        %v1035 = vmul.f32 %v1034, 0.6931472
        %v1036 = vlog2.pop %v1025
        %v1037 = vmul.f32 %v1036, 0.6931472
        %v1038 = vlog2.pop %v1026
        %v1039 = vmul.f32 %v1038, 0.6931472
        %v1040 = vlog2.pop %v1027
        %v1041 = vmul.f32 %v1040, 0.6931472
        %v1042 = vlog2.pop %v1028
        %v1043 = vmul.f32 %v1042, 0.6931472
        %v1044 = vlog2.pop %v1029
        %v1045 = vmul.f32 %v1044, 0.6931472
        %v1046 = vstv %s863
        %v1047 = vmul.f32 %v1046, %v1031
        %v1048 = vmul.f32 %v1046, %v1033
        %v1049 = vmul.f32 %v1046, %v1035
        %v1050 = vmul.f32 %v1046, %v1037
        %v1051 = vmul.f32 %v1046, %v1039
        %v1052 = vmul.f32 %v1046, %v1041
        %v1053 = vmul.f32 %v1046, %v1043
        %v1054 = vmul.f32 %v1046, %v1045
        %v1055 = vmul.f32 %v1047, 1.442695
        %v1056 = vpow.pop %v1055
        %v1057 = vmul.f32 %v1048, 1.442695
        %v1058 = vpow.pop %v1057
        %v1059 = vmul.f32 %v1049, 1.442695
        %v1060 = vpow.pop %v1059
        %v1061 = vmul.f32 %v1050, 1.442695
        %v1062 = vpow.pop %v1061
        %v1063 = vmul.f32 %v1051, 1.442695
        %v1064 = vpow.pop %v1063
        %v1065 = vmul.f32 %v1052, 1.442695
        %v1066 = vpow.pop %v1065
        %v1067 = vmul.f32 %v1053, 1.442695
        %v1068 = vpow.pop %v1067
        %v1069 = vmul.f32 %v1054, 1.442695
        %v1070 = vpow.pop %v1069
        %v1071 = vsel %vm1014, %v1056, 0.0
        %v1072 = vsel %vm1015, %v1058, 0.0
        %v1073 = vsel %vm1016, %v1060, 0.0
        %v1074 = vsel %vm1017, %v1062, 0.0
        %v1075 = vsel %vm1018, %v1064, 0.0
        %v1076 = vsel %vm1019, %v1066, 0.0
        %v1077 = vsel %vm1020, %v1068, 0.0
        %v1078 = vsel %vm1021, %v1070, 0.0
        %vm1079 = vcmp.ge.f32.partialorder %v998, 0.0
        %vm1080 = vcmp.ge.f32.partialorder %v999, 0.0
        %vm1081 = vcmp.ge.f32.partialorder %v1000, 0.0
        %vm1082 = vcmp.ge.f32.partialorder %v1001, 0.0
        %vm1083 = vcmp.ge.f32.partialorder %v1002, 0.0
        %vm1084 = vcmp.ge.f32.partialorder %v1003, 0.0
        %vm1085 = vcmp.ge.f32.partialorder %v1004, 0.0
        %vm1086 = vcmp.ge.f32.partialorder %v1005, 0.0
        %v1087 = vmul.f32 %v998, 0.2
        %v1088 = vmul.f32 %v999, 0.2
        %v1089 = vmul.f32 %v1000, 0.2
        %v1090 = vmul.f32 %v1001, 0.2
        %v1091 = vmul.f32 %v1002, 0.2
        %v1092 = vmul.f32 %v1003, 0.2
        %v1093 = vmul.f32 %v1004, 0.2
        %v1094 = vmul.f32 %v1005, 0.2
        %v1095 = vsel %vm1079, %v998, %v1087
        %v1096 = vsel %vm1080, %v999, %v1088
        %v1097 = vsel %vm1081, %v1000, %v1089
        %v1098 = vsel %vm1082, %v1001, %v1090
        %v1099 = vsel %vm1083, %v1002, %v1091
        %v1100 = vsel %vm1084, %v1003, %v1092
        %v1101 = vsel %vm1085, %v1004, %v1093
        %v1102 = vsel %vm1086, %v1005, %v1094
        %vm1103 = vcmask 261120
        %1104 = vst.msk [vmem:[%s371] sm:$0xff] %vm1103, %v1095
        %1105 = vst.msk [vmem:[%s371 + $0x8] sm:$0xff] %vm1103, %v1096
        %1106 = vst.msk [vmem:[%s371 + $0x10] sm:$0xff] %vm1103, %v1097
        %1107 = vst.msk [vmem:[%s371 + $0x18] sm:$0xff] %vm1103, %v1098
        %1108 = vst.msk [vmem:[%s371 + $0x20] sm:$0xff] %vm1103, %v1099
        %1109 = vst.msk [vmem:[%s371 + $0x28] sm:$0xff] %vm1103, %v1100
        %1110 = vst.msk [vmem:[%s371 + $0x30] sm:$0xff] %vm1103, %v1101
        %1111 = vst.msk [vmem:[%s371 + $0x38] sm:$0xff] %vm1103, %v1102
        %1120 = vrot.lane.b32.xlu0 %v1071, 96
        %v1121 = vpop.permute.xlu0 %1120
        %1122 = vrot.lane.b32.xlu0 %v1072, 96
        %v1123 = vpop.permute.xlu0 %1122
        %1124 = vrot.lane.b32.xlu0 %v1073, 96
        %v1125 = vpop.permute.xlu0 %1124
        %1126 = vrot.lane.b32.xlu0 %v1074, 96
        %v1127 = vpop.permute.xlu0 %1126
        %1128 = vrot.lane.b32.xlu0 %v1075, 96
        %v1129 = vpop.permute.xlu0 %1128
        %1130 = vrot.lane.b32.xlu0 %v1076, 96
        %v1131 = vpop.permute.xlu0 %1130
        %1132 = vrot.lane.b32.xlu0 %v1077, 96
        %v1133 = vpop.permute.xlu0 %1132
        %1134 = vrot.lane.b32.xlu0 %v1078, 96
        %v1135 = vpop.permute.xlu0 %1134
        %1144 = vst.msk [vmem:[%s378] sm:$0xff] %vm1103, %v1121
        %1145 = vst.msk [vmem:[%s378 + $0x8] sm:$0xff] %vm1103, %v1123
        %1146 = vst.msk [vmem:[%s378 + $0x10] sm:$0xff] %vm1103, %v1125
        %1147 = vst.msk [vmem:[%s378 + $0x18] sm:$0xff] %vm1103, %v1127
        %1148 = vst.msk [vmem:[%s378 + $0x20] sm:$0xff] %vm1103, %v1129
        %1149 = vst.msk [vmem:[%s378 + $0x28] sm:$0xff] %vm1103, %v1131
        %1150 = vst.msk [vmem:[%s378 + $0x30] sm:$0xff] %vm1103, %v1133
        %1151 = vst.msk [vmem:[%s378 + $0x38] sm:$0xff] %vm1103, %v1135
        %1152 = vst.msk [vmem:[%s385] sm:$0xff] %vm1103, %v851
        %1153 = vst.msk [vmem:[%s385 + $0x8] sm:$0xff] %vm1103, %v852
        %1154 = vst.msk [vmem:[%s385 + $0x10] sm:$0xff] %vm1103, %v853
        %1155 = vst.msk [vmem:[%s385 + $0x18] sm:$0xff] %vm1103, %v854
        %1156 = vst.msk [vmem:[%s385 + $0x20] sm:$0xff] %vm1103, %v855
        %1157 = vst.msk [vmem:[%s385 + $0x28] sm:$0xff] %vm1103, %v856
        %1158 = vst.msk [vmem:[%s385 + $0x30] sm:$0xff] %vm1103, %v857
        %1159 = vst.msk [vmem:[%s385 + $0x38] sm:$0xff] %vm1103, %v858
        %1160 = vst.msk [vmem:[%s392] sm:$0xff] %vm1103, %v975
        %1161 = vst.msk [vmem:[%s392 + $0x8] sm:$0xff] %vm1103, %v977
        %1162 = vst.msk [vmem:[%s392 + $0x10] sm:$0xff] %vm1103, %v979
        %1163 = vst.msk [vmem:[%s392 + $0x18] sm:$0xff] %vm1103, %v981
        %1164 = vst.msk [vmem:[%s392 + $0x20] sm:$0xff] %vm1103, %v983
        %1165 = vst.msk [vmem:[%s392 + $0x28] sm:$0xff] %vm1103, %v985
        %1166 = vst.msk [vmem:[%s392 + $0x30] sm:$0xff] %vm1103, %v987
        %1167 = vst.msk [vmem:[%s392 + $0x38] sm:$0xff] %vm1103, %v989
        %s1168 = sand.u32 %s153, 1
        %s1169 = scalar_lea.sflag [#allocation4], %s1168
        %s1170 = sand.u32 %s153, 1
        %s1171 = smul.addr %s1170, 64
        %s1172 = scalar_lea.vmem [#allocation6], %s1171
        %s1173 = sand.u32 %s29, 1
        %s1174 = scalar_lea.sflag [#allocation8], %s1173
        %s1175 = sand.u32 %s181, 1
        %s1176 = smul.addr %s1175, 64
        %s1177 = scalar_lea.vmem [#allocation7], %s1176
        %s1178 = sand.u32 %s29, 1
        %s1179 = scalar_lea.sflag [#allocation8], %s1178
        %s1180 = sand.u32 %s209, 1
        %s1181 = smul.addr %s1180, 64
        %s1182 = scalar_lea.vmem [#allocation9], %s1181
        %s1183 = sand.u32 %s237, 1
        %s1184 = scalar_lea.sflag [#allocation11], %s1183
        %s1185 = sand.u32 %s237, 1
        %s1186 = smul.addr %s1185, 64
        %s1187 = scalar_lea.vmem [#allocation10], %s1186
        // Predicated region
        $region41: #{forward_attention.1} parent=35 // pred_check
          %p1188 = pneg %p163
        $region42: #{forward_attention.1} parent=35 // pred_check_branch
          %1190 = sbr.rel (%p1188) target = $region44
        $region43: #{forward_attention.1} parent=35 // pred_region
          %s1191 = smul.u32 8, %s34
          %s1193 = ssub.s32 1024, 1024
          %1194 = vsyncadd %s1169, %s1193
          %s1195 = smul.addr %s33, 8
          %s1196 = sadd.s32 %s1191, %s1195
          %s1197 = smul.addr %s1196, 128
          %s1198 = scalar_lea.hbm %s4, %s1197
          %s1199 = sshll.u32 %s1172, 4
          %s1200 = int_to_ptr.vmem [resolvable:$true] %s1199
          %1205 = dma.vmem_to_hbm [thread:$0]  %s1200, 1024, %s1198, %s1169, 128, 128, 8
        $region44: #{forward_attention.1} parent=35 // pred_fallthru
          _
        // Predicated region
        $region45: #{forward_attention.1} parent=35 // pred_check
          %p1206 = pneg %p191
        $region46: #{forward_attention.1} parent=35 // pred_check_branch
          %1208 = sbr.rel (%p1206) target = $region48
        $region47: #{forward_attention.1} parent=35 // pred_region
          %s1209 = smul.u32 8, %s34
          %s1211 = ssub.s32 1024, 1024
          %1212 = vsyncadd %s1174, %s1211
          %s1213 = smul.addr %s33, 8
          %s1214 = sadd.s32 %s1209, %s1213
          %s1215 = smul.addr %s1214, 128
          %s1216 = scalar_lea.hbm %s5, %s1215
          %s1217 = sshll.u32 %s1177, 4
          %s1218 = int_to_ptr.vmem [resolvable:$true] %s1217
          %1223 = dma.vmem_to_hbm [thread:$0]  %s1218, 1024, %s1216, %s1174, 128, 128, 8
        $region48: #{forward_attention.1} parent=35 // pred_fallthru
          _
        // Predicated region
        $region49: #{forward_attention.1} parent=35 // pred_check
          %p1224 = pneg %p219
        $region50: #{forward_attention.1} parent=35 // pred_check_branch
          %1226 = sbr.rel (%p1224) target = $region52
        $region51: #{forward_attention.1} parent=35 // pred_region
          %s1227 = smul.u32 8, %s34
          %s1229 = ssub.s32 1024, 1024
          %1230 = vsyncadd %s1179, %s1229
          %s1231 = smul.addr %s33, 8
          %s1232 = sadd.s32 %s1227, %s1231
          %s1233 = smul.addr %s1232, 128
          %s1234 = scalar_lea.hbm %s6, %s1233
          %s1235 = sshll.u32 %s1182, 4
          %s1236 = int_to_ptr.vmem [resolvable:$true] %s1235
          %1241 = dma.vmem_to_hbm [thread:$0]  %s1236, 1024, %s1234, %s1179, 128, 128, 8
        $region52: #{forward_attention.1} parent=35 // pred_fallthru
          _
        // Predicated region
        $region53: #{forward_attention.1} parent=35 // pred_check
          %p1242 = pneg %p247
        $region54: #{forward_attention.1} parent=35 // pred_check_branch
          %1244 = sbr.rel (%p1242) target = $region56
        $region55: #{forward_attention.1} parent=35 // pred_region
          %s1245 = smul.u32 8, %s34
          %s1247 = ssub.s32 1024, 1024
          %1248 = vsyncadd %s1184, %s1247
          %s1249 = smul.addr %s33, 8
          %s1250 = sadd.s32 %s1245, %s1249
          %s1251 = smul.addr %s1250, 128
          %s1252 = scalar_lea.hbm %s7, %s1251
          %s1253 = sshll.u32 %s1187, 4
          %s1254 = int_to_ptr.vmem [resolvable:$true] %s1253
          %1259 = dma.vmem_to_hbm [thread:$0]  %s1254, 1024, %s1252, %s1184, 128, 128, 8
        $region56: #{forward_attention.1} parent=35 // pred_fallthru
          _
      $region36: #{forward_attention.1} parent=5 // pred_fallthru
        _
      %p1260 = scmp.le.s32.totalorder 2, %s24
      // Predicated region
      $region57: #{forward_attention.1} parent=5 // pred_check
        %p1261 = pneg %p1260
      $region58: #{forward_attention.1} parent=5 // pred_check_branch
        %1263 = sbr.rel (%p1261) target = $region60
      $region59: #{forward_attention.1} parent=5 // pred_region
        %s1264 = ssub.s32 %s24, 2
        // Predicated region
        $region61: #{forward_attention.1} parent=59 // pred_check
          %p1265 = pneg %p169
        $region62: #{forward_attention.1} parent=59 // pred_check_branch
          %1267 = sbr.rel (%p1265) target = $region64
        $region63: #{forward_attention.1} parent=59 // pred_region
          %s1268 = sand.u32 %s154, 1
          %s1269 = scalar_lea.sflag [#allocation4], %s1268
          %s1270 = sand.u32 %s154, 1
          %s1271 = smul.addr %s1270, 64
          %s1272 = scalar_lea.vmem [#allocation6], %s1271
          %1273 = dma.done %s1269, 1024
        $region64: #{forward_attention.1} parent=59 // pred_fallthru
          _
        // Predicated region
        $region65: #{forward_attention.1} parent=59 // pred_check
          %p1274 = pneg %p197
        $region66: #{forward_attention.1} parent=59 // pred_check_branch
          %1276 = sbr.rel (%p1274) target = $region68
        $region67: #{forward_attention.1} parent=59 // pred_region
          %s1277 = sand.u32 %s30, 1
          %s1278 = scalar_lea.sflag [#allocation8], %s1277
          %s1279 = sand.u32 %s182, 1
          %s1280 = smul.addr %s1279, 64
          %s1281 = scalar_lea.vmem [#allocation7], %s1280
          %1282 = dma.done %s1278, 1024
        $region68: #{forward_attention.1} parent=59 // pred_fallthru
          _
        // Predicated region
        $region69: #{forward_attention.1} parent=59 // pred_check
          %p1283 = pneg %p225
        $region70: #{forward_attention.1} parent=59 // pred_check_branch
          %1285 = sbr.rel (%p1283) target = $region72
        $region71: #{forward_attention.1} parent=59 // pred_region
          %s1286 = sand.u32 %s30, 1
          %s1287 = scalar_lea.sflag [#allocation8], %s1286
          %s1288 = sand.u32 %s210, 1
          %s1289 = smul.addr %s1288, 64
          %s1290 = scalar_lea.vmem [#allocation9], %s1289
          %1291 = dma.done %s1287, 1024
        $region72: #{forward_attention.1} parent=59 // pred_fallthru
          _
        // Predicated region
        $region73: #{forward_attention.1} parent=59 // pred_check
          %p1292 = pneg %p253
        $region74: #{forward_attention.1} parent=59 // pred_check_branch
          %1294 = sbr.rel (%p1292) target = $region76
        $region75: #{forward_attention.1} parent=59 // pred_region
          %s1295 = sand.u32 %s238, 1
          %s1296 = scalar_lea.sflag [#allocation11], %s1295
          %s1297 = sand.u32 %s238, 1
          %s1298 = smul.addr %s1297, 64
          %s1299 = scalar_lea.vmem [#allocation10], %s1298
          %1300 = dma.done %s1296, 1024
        $region76: #{forward_attention.1} parent=59 // pred_fallthru
          _
      $region60: #{forward_attention.1} parent=5 // pred_fallthru
        _
    $region6: #{forward_attention.1} parent=1 // loop_footer
      %s28 = sadd.s32 1, %s24
    $region7: #{forward_attention.1} parent=1 // loop_footer_branch
      %23 = sbr.rel target = $region3
    $region8: #{forward_attention.1} parent=1 // loop_exit
      _
    %1301 = vsyncpa [#allocation4], 1
    %s1302 = scalar_lea.sflag [#allocation4], 1
    %1303 = vsyncpa %s1302, 1
    %1304 = vsyncpa [#allocation8], 1
    %s1305 = scalar_lea.sflag [#allocation8], 1
    %1306 = vsyncpa %s1305, 1
    %1307 = vsyncpa [#allocation11], 1
    %s1308 = scalar_lea.sflag [#allocation11], 1
    %1309 = vsyncpa %s1308, 1
    %1310 = vsyncpa [#allocation5], 1
    %s1311 = scalar_lea.sflag [#allocation5], 1
    %1312 = vsyncpa %s1311, 1

</llo_original>
